<compile_context>
chip_gen: v6e
topology: v6e:2x2x1
jax: 0.10.0
libtpu: 0.0.40
codegen_flags: <defaults>
</compile_context>

<pallas_src>
import functools
import numpy as np

import jax
import jax.numpy as jnp
from jax.experimental import pallas as pl
from jax.experimental.pallas import tpu as pltpu


# ----------------------------- kernel ---------------------------------------

def _layer_norm(x, g, b, eps=1e-12):
    mu = jnp.mean(x, axis=-1, keepdims=True)
    xc = x - mu
    var = jnp.mean(xc * xc, axis=-1, keepdims=True)
    return xc * jax.lax.rsqrt(var + eps) * g + b


def _encoder_kernel(x_ref,
                    ge_ref, be_ref,
                    wq_ref, bq_ref, wk_ref, bk_ref, wv_ref, bv_ref,
                    wo_ref, bo_ref, g1_ref, b1_ref,
                    wf1_ref, bf1_ref, wf2_ref, bf2_ref,
                    g2_ref, b2_ref,
                    out_ref,
                    *, num_heads):
    Bb, T, D = x_ref.shape
    M = Bb * T
    H = num_heads
    dh = D // H
    scale = jnp.float32(1.0 / np.sqrt(dh))

    # [Bb, T, D] -> [M, D]; LayerNorm / softmax math in f32 (v5e has no bf16 VPU).
    x = x_ref[...].astype(jnp.float32).reshape(M, D)
    x = _layer_norm(x, ge_ref[0], be_ref[0])
    xb = x.astype(jnp.bfloat16)

    # QKV projections: bf16 operands, f32 MXU accumulation.
    q = jnp.dot(xb, wq_ref[...], preferred_element_type=jnp.float32) + bq_ref[0]
    k = jnp.dot(xb, wk_ref[...], preferred_element_type=jnp.float32) + bk_ref[0]
    v = jnp.dot(xb, wv_ref[...], preferred_element_type=jnp.float32) + bv_ref[0]
    # Fold 1/sqrt(dh) into q: an [M, D] multiply instead of scaling [H*Bb, T, T].
    q = q * scale

    # Split heads into one batched [H*Bb, T, dh] layout (lane dim = dh) so the
    # attention is two batched dot_generals instead of 2*H tiny per-head matmuls.
    def split_heads(z):
        parts = [z[:, h * dh:(h + 1) * dh] for h in range(H)]   # H x [M, dh]
        z3 = jnp.stack(parts, axis=0)                           # [H, M, dh]
        return z3.reshape(H * Bb, T, dh).astype(jnp.bfloat16)   # [H*Bb, T, dh]

    qh = split_heads(q)
    kh = split_heads(k)
    vh = split_heads(v)

    s = jnp.einsum('bqd,bkd->bqk', qh, kh,
                   preferred_element_type=jnp.float32)           # [H*Bb, T, T]
    s = s - jnp.max(s, axis=-1, keepdims=True)
    p = jnp.exp(s)
    p = p * pl.reciprocal(jnp.sum(p, axis=-1, keepdims=True), approx=True)
    o = jnp.einsum('bqk,bkd->bqd', p.astype(jnp.bfloat16), vh,
                   preferred_element_type=jnp.float32)           # [H*Bb, T, dh]

    # Merge heads back to [M, D] (head-major lane concat, matching the QKV layout).
    o3 = o.reshape(H, M, dh)
    attn = jnp.concatenate([o3[h] for h in range(H)], axis=-1)   # [M, D]

    # Attention output projection + residual + LayerNorm.
    attn = jnp.dot(attn.astype(jnp.bfloat16), wo_ref[...],
                   preferred_element_type=jnp.float32) + bo_ref[0]
    h1 = _layer_norm(x + attn, g1_ref[0], b1_ref[0])

    # Feed-forward + residual + LayerNorm.
    ff = jnp.dot(h1.astype(jnp.bfloat16), wf1_ref[...],
                 preferred_element_type=jnp.float32) + bf1_ref[0]
    # TODO(synk): exact erf GELU (BERT) instead of the tanh approximation if
    # bit-closeness to the HF reference is required.
    ff = jax.nn.gelu(ff)
    ff = jnp.dot(ff.astype(jnp.bfloat16), wf2_ref[...],
                 preferred_element_type=jnp.float32) + bf2_ref[0]
    out = _layer_norm(h1 + ff, g2_ref[0], b2_ref[0])

    out_ref[...] = out.reshape(Bb, T, D).astype(out_ref.dtype)


# ----------------------------- wrapper ---------------------------------------

def cap_encoder_forward(batch_token_ids, params, *, num_heads, block_b=None):
    """Equivalent of CapEncoder.forward(batch_token_ids) -> embed [B, T, D]."""
    B, T = batch_token_ids.shape
    D = params["word_emb"].shape[1]
    F = params["wf1"].shape[1]
    H = num_heads

    # Lane-alignment contract (pad upstream if needed): D, F multiples of 128,
    # T a multiple of 8, D divisible by num_heads.
    assert D % 128 == 0 and F % 128 == 0, "pad hidden/FFN dims to multiples of 128"
    assert T % 8 == 0, "pad sequence length to a multiple of 8"
    assert D % H == 0

    if block_b is None:  # largest divisor of B that is <= 8
        block_b = max(d for d in range(1, min(B, 8) + 1) if B % d == 0)
    Bb = block_b
    assert B % Bb == 0

    # Glue: embedding lookup (gather) stays in plain JAX; activations enter the
    # kernel as bf16 to halve the extra HBM round trip.
    # TODO(synk): fuse the gather into the kernel via scalar-prefetched token
    # ids + in-kernel row DMA to remove the x round trip entirely.
    x = params["word_emb"][batch_token_ids] + params["pos_emb"][None, :T, :]
    x = x.astype(jnp.bfloat16)

    bf16, f32 = jnp.bfloat16, jnp.float32
    weights = [
        params["gamma_e"].astype(f32), params["beta_e"].astype(f32),
        params["wq"].astype(bf16), params["bq"].astype(f32),
        params["wk"].astype(bf16), params["bk"].astype(f32),
        params["wv"].astype(bf16), params["bv"].astype(f32),
        params["wo"].astype(bf16), params["bo"].astype(f32),
        params["gamma_1"].astype(f32), params["beta_1"].astype(f32),
        params["wf1"].astype(bf16), params["bf1"].astype(f32),
        params["wf2"].astype(bf16), params["bf2"].astype(f32),
        params["gamma_2"].astype(f32), params["beta_2"].astype(f32),
    ]

    in_specs = [pl.BlockSpec((Bb, T, D), lambda b: (b, 0, 0))]
    for w in weights:  # grid-invariant weight blocks
        in_specs.append(pl.BlockSpec(w.shape, lambda b, n=w.ndim: (0,) * n))

    kernel = functools.partial(_encoder_kernel, num_heads=H)

    # Explicit VMEM budget: resident bf16 weights + double-buffered act blocks.
    weight_bytes = sum(int(np.prod(w.shape)) * w.dtype.itemsize for w in weights)
    act_block_bytes = Bb * T * D * (2 + 4)  # bf16 in-block + f32 out-block
    vmem_limit = int(min(64 << 20,
                         max(16 << 20,
                             2 * (weight_bytes + act_block_bytes) + (4 << 20))))

    dh = D // H
    flops = 2 * B * T * (4 * D * D + 2 * D * F) + 4 * B * H * T * T * dh
    transcendentals = B * H * T * T + B * T * F
    bytes_accessed = int(x.size * x.dtype.itemsize) + B * T * D * 4 + weight_bytes

    return pl.pallas_call(
        kernel,
        out_shape=jax.ShapeDtypeStruct((B, T, D), jnp.float32),
        grid_spec=pltpu.PrefetchScalarGridSpec(
            num_scalar_prefetch=0,
            grid=(B // Bb,),
            in_specs=in_specs,
            out_specs=pl.BlockSpec((Bb, T, D), lambda b: (b, 0, 0)),
        ),
        compiler_params=pltpu.CompilerParams(
            dimension_semantics=("parallel",),
            vmem_limit_bytes=vmem_limit),
        cost_estimate=pl.CostEstimate(
            flops=flops,
            transcendentals=transcendentals,
            bytes_accessed=bytes_accessed),
    )(x, *weights)


# ----------------------------- params ----------------------------------------

def init_params(key, vocab_size, max_pos, D, F):
    ks = jax.random.split(key, 8)

    def xavier(k, shape):
        fan_in, fan_out = shape[0], shape[1]
        lim = np.sqrt(6.0 / (fan_in + fan_out))
        return jax.random.uniform(k, shape, jnp.float32, -lim, lim)

    return {
        "word_emb": 0.02 * jax.random.normal(ks[0], (vocab_size, D), jnp.float32),
        "pos_emb": 0.02 * jax.random.normal(ks[1], (max_pos, D), jnp.float32),
        "gamma_e": jnp.ones((1, D), jnp.float32),
        "beta_e": jnp.zeros((1, D), jnp.float32),
        "wq": xavier(ks[2], (D, D)), "bq": jnp.zeros((1, D), jnp.float32),
        "wk": xavier(ks[3], (D, D)), "bk": jnp.zeros((1, D), jnp.float32),
        "wv": xavier(ks[4], (D, D)), "bv": jnp.zeros((1, D), jnp.float32),
        "wo": xavier(ks[5], (D, D)), "bo": jnp.zeros((1, D), jnp.float32),
        "gamma_1": jnp.ones((1, D), jnp.float32),
        "beta_1": jnp.zeros((1, D), jnp.float32),
        "wf1": xavier(ks[6], (D, F)), "bf1": jnp.zeros((1, F), jnp.float32),
        "wf2": xavier(ks[7], (F, D)), "bf2": jnp.zeros((1, D), jnp.float32),
        "gamma_2": jnp.ones((1, D), jnp.float32),
        "beta_2": jnp.zeros((1, D), jnp.float32),
    }


# ----------------------------- main -------------------------------------------

if __name__ == "__main__":
    # Small but lane-aligned shapes (D, F multiples of 128; T multiple of 8).
    B, T, D, H, F = 4, 8, 128, 2, 256
    VOCAB, MAX_POS = 64, 16

    key = jax.random.PRNGKey(0)
    k_tok, k_par = jax.random.split(key)

    batch_token_ids = jax.random.randint(k_tok, (B, T), 0, VOCAB, dtype=jnp.int32)
    params = init_params(k_par, VOCAB, MAX_POS, D, F)

    # const.output_attentions == False  ->  forward returns embed only.
    # TODO(synk): output_attentions=True branch (returning per-head attention
    # probabilities alongside embed) is not exposed by this kernel.
    embed = cap_encoder_forward(batch_token_ids, params, num_heads=H, block_b=2)
    embed = jax.block_until_ready(embed)

    assert embed.shape == (B, T, D) and embed.dtype == jnp.float32
    assert bool(jnp.all(jnp.isfinite(embed)))
    print("KERNEL_OK")
</pallas_src>

<mosaic_0001>
module attributes {stable_mosaic.version = 11 : i64} {
  func.func @_encoder_kernel(%arg0: i32, %arg1: memref<2x8x128xbf16, #tpu.memory_space<vmem>>, %arg2: memref<1x128xf32, #tpu.memory_space<vmem>>, %arg3: memref<1x128xf32, #tpu.memory_space<vmem>>, %arg4: memref<128x128xbf16, #tpu.memory_space<vmem>>, %arg5: memref<1x128xf32, #tpu.memory_space<vmem>>, %arg6: memref<128x128xbf16, #tpu.memory_space<vmem>>, %arg7: memref<1x128xf32, #tpu.memory_space<vmem>>, %arg8: memref<128x128xbf16, #tpu.memory_space<vmem>>, %arg9: memref<1x128xf32, #tpu.memory_space<vmem>>, %arg10: memref<128x128xbf16, #tpu.memory_space<vmem>>, %arg11: memref<1x128xf32, #tpu.memory_space<vmem>>, %arg12: memref<1x128xf32, #tpu.memory_space<vmem>>, %arg13: memref<1x128xf32, #tpu.memory_space<vmem>>, %arg14: memref<128x256xbf16, #tpu.memory_space<vmem>>, %arg15: memref<1x256xf32, #tpu.memory_space<vmem>>, %arg16: memref<256x128xbf16, #tpu.memory_space<vmem>>, %arg17: memref<1x128xf32, #tpu.memory_space<vmem>>, %arg18: memref<1x128xf32, #tpu.memory_space<vmem>>, %arg19: memref<1x128xf32, #tpu.memory_space<vmem>>, %arg20: memref<2x8x128xf32, #tpu.memory_space<vmem>>) attributes {dimension_semantics = [#tpu.dimension_semantics<parallel>], iteration_bounds = array<i64: 2>, scalar_prefetch = 0 : i64, scratch_operands = 0 : i64, tpu.core_type = #tpu.core_type<tc>, window_params = [{transform_indices = @transform_0, window_bounds = array<i64: 2, 8, 128>}, {pipeline_mode = #tpu.pipeline_mode<synchronous>, transform_indices = @transform_1, window_bounds = array<i64: 1, 128>}, {pipeline_mode = #tpu.pipeline_mode<synchronous>, transform_indices = @transform_2, window_bounds = array<i64: 1, 128>}, {pipeline_mode = #tpu.pipeline_mode<synchronous>, transform_indices = @transform_3, window_bounds = array<i64: 128, 128>}, {pipeline_mode = #tpu.pipeline_mode<synchronous>, transform_indices = @transform_4, window_bounds = array<i64: 1, 128>}, {pipeline_mode = #tpu.pipeline_mode<synchronous>, transform_indices = @transform_5, window_bounds = array<i64: 128, 128>}, {pipeline_mode = #tpu.pipeline_mode<synchronous>, transform_indices = @transform_6, window_bounds = array<i64: 1, 128>}, {pipeline_mode = #tpu.pipeline_mode<synchronous>, transform_indices = @transform_7, window_bounds = array<i64: 128, 128>}, {pipeline_mode = #tpu.pipeline_mode<synchronous>, transform_indices = @transform_8, window_bounds = array<i64: 1, 128>}, {pipeline_mode = #tpu.pipeline_mode<synchronous>, transform_indices = @transform_9, window_bounds = array<i64: 128, 128>}, {pipeline_mode = #tpu.pipeline_mode<synchronous>, transform_indices = @transform_10, window_bounds = array<i64: 1, 128>}, {pipeline_mode = #tpu.pipeline_mode<synchronous>, transform_indices = @transform_11, window_bounds = array<i64: 1, 128>}, {pipeline_mode = #tpu.pipeline_mode<synchronous>, transform_indices = @transform_12, window_bounds = array<i64: 1, 128>}, {pipeline_mode = #tpu.pipeline_mode<synchronous>, transform_indices = @transform_13, window_bounds = array<i64: 128, 256>}, {pipeline_mode = #tpu.pipeline_mode<synchronous>, transform_indices = @transform_14, window_bounds = array<i64: 1, 256>}, {pipeline_mode = #tpu.pipeline_mode<synchronous>, transform_indices = @transform_15, window_bounds = array<i64: 256, 128>}, {pipeline_mode = #tpu.pipeline_mode<synchronous>, transform_indices = @transform_16, window_bounds = array<i64: 1, 128>}, {pipeline_mode = #tpu.pipeline_mode<synchronous>, transform_indices = @transform_17, window_bounds = array<i64: 1, 128>}, {pipeline_mode = #tpu.pipeline_mode<synchronous>, transform_indices = @transform_18, window_bounds = array<i64: 1, 128>}, {transform_indices = @transform_19, window_bounds = array<i64: 2, 8, 128>}]} {
    %c0 = arith.constant 0 : index
    %c0_0 = arith.constant 0 : index
    %c0_1 = arith.constant 0 : index
    %0 = vector.load %arg1[%c0, %c0_0, %c0_1] : memref<2x8x128xbf16, #tpu.memory_space<vmem>>, vector<2x8x128xbf16>
    %1 = arith.extf %0 : vector<2x8x128xbf16> to vector<2x8x128xf32>
    %2 = vector.shape_cast %1 : vector<2x8x128xf32> to vector<16x128xf32>
    %c0_2 = arith.constant 0 : index
    %c0_3 = arith.constant 0 : index
    %3 = vector.load %arg2[%c0_2, %c0_3] : memref<1x128xf32, #tpu.memory_space<vmem>>, vector<1x128xf32>
    %4 = vector.shape_cast %3 : vector<1x128xf32> to vector<128xf32>
    %c0_4 = arith.constant 0 : index
    %c0_5 = arith.constant 0 : index
    %5 = vector.load %arg3[%c0_4, %c0_5] : memref<1x128xf32, #tpu.memory_space<vmem>>, vector<1x128xf32>
    %6 = vector.shape_cast %5 : vector<1x128xf32> to vector<128xf32>
    %cst = arith.constant dense<0.000000e+00> : vector<16xf32>
    %7 = vector.multi_reduction <add>, %2, %cst [1] : vector<16x128xf32> to vector<16xf32>
    %8 = vector.shape_cast %7 : vector<16xf32> to vector<16x1xf32>
    %cst_6 = arith.constant 1.280000e+02 : f32
    %9 = vector.broadcast %cst_6 : f32 to vector<16x1xf32>
    %10 = arith.divf %8, %9 : vector<16x1xf32>
    %11 = vector.broadcast %10 : vector<16x1xf32> to vector<16x128xf32>
    %12 = arith.subf %2, %11 : vector<16x128xf32>
    %13 = arith.mulf %12, %12 : vector<16x128xf32>
    %cst_7 = arith.constant dense<0.000000e+00> : vector<16xf32>
    %14 = vector.multi_reduction <add>, %13, %cst_7 [1] : vector<16x128xf32> to vector<16xf32>
    %15 = vector.shape_cast %14 : vector<16xf32> to vector<16x1xf32>
    %cst_8 = arith.constant 1.280000e+02 : f32
    %16 = vector.broadcast %cst_8 : f32 to vector<16x1xf32>
    %17 = arith.divf %15, %16 : vector<16x1xf32>
    %cst_9 = arith.constant 9.99999996E-13 : f32
    %18 = vector.broadcast %cst_9 : f32 to vector<16x1xf32>
    %19 = arith.addf %17, %18 : vector<16x1xf32>
    %20 = math.rsqrt %19 : vector<16x1xf32>
    %21 = vector.broadcast %20 : vector<16x1xf32> to vector<16x128xf32>
    %22 = arith.mulf %12, %21 : vector<16x128xf32>
    %23 = vector.shape_cast %4 : vector<128xf32> to vector<1x128xf32>
    %24 = vector.broadcast %23 : vector<1x128xf32> to vector<16x128xf32>
    %25 = arith.mulf %22, %24 : vector<16x128xf32>
    %26 = vector.shape_cast %6 : vector<128xf32> to vector<1x128xf32>
    %27 = vector.broadcast %26 : vector<1x128xf32> to vector<16x128xf32>
    %28 = arith.addf %25, %27 : vector<16x128xf32>
    %29 = arith.truncf %28 : vector<16x128xf32> to vector<16x128xbf16>
    %c0_10 = arith.constant 0 : index
    %c0_11 = arith.constant 0 : index
    %30 = vector.load %arg4[%c0_10, %c0_11] : memref<128x128xbf16, #tpu.memory_space<vmem>>, vector<128x128xbf16>
    %cst_12 = arith.constant dense<0.000000e+00> : vector<16x128xf32>
    %31 = tpu.matmul %29, %30, %cst_12 {dimension_numbers = #tpu.dot_dimension_numbers<[1], [0], [0], [1], [0, 0, 1, 1], [], []>} : vector<16x128xbf16>, vector<128x128xbf16>, vector<16x128xf32> -> vector<16x128xf32>
    %c0_13 = arith.constant 0 : index
    %c0_14 = arith.constant 0 : index
    %32 = vector.load %arg5[%c0_13, %c0_14] : memref<1x128xf32, #tpu.memory_space<vmem>>, vector<1x128xf32>
    %33 = vector.shape_cast %32 : vector<1x128xf32> to vector<128xf32>
    %34 = vector.shape_cast %33 : vector<128xf32> to vector<1x128xf32>
    %35 = vector.broadcast %34 : vector<1x128xf32> to vector<16x128xf32>
    %36 = arith.addf %31, %35 : vector<16x128xf32>
    %c0_15 = arith.constant 0 : index
    %c0_16 = arith.constant 0 : index
    %37 = vector.load %arg6[%c0_15, %c0_16] : memref<128x128xbf16, #tpu.memory_space<vmem>>, vector<128x128xbf16>
    %cst_17 = arith.constant dense<0.000000e+00> : vector<16x128xf32>
    %38 = tpu.matmul %29, %37, %cst_17 {dimension_numbers = #tpu.dot_dimension_numbers<[1], [0], [0], [1], [0, 0, 1, 1], [], []>} : vector<16x128xbf16>, vector<128x128xbf16>, vector<16x128xf32> -> vector<16x128xf32>
    %c0_18 = arith.constant 0 : index
    %c0_19 = arith.constant 0 : index
    %39 = vector.load %arg7[%c0_18, %c0_19] : memref<1x128xf32, #tpu.memory_space<vmem>>, vector<1x128xf32>
    %40 = vector.shape_cast %39 : vector<1x128xf32> to vector<128xf32>
    %41 = vector.shape_cast %40 : vector<128xf32> to vector<1x128xf32>
    %42 = vector.broadcast %41 : vector<1x128xf32> to vector<16x128xf32>
    %43 = arith.addf %38, %42 : vector<16x128xf32>
    %c0_20 = arith.constant 0 : index
    %c0_21 = arith.constant 0 : index
    %44 = vector.load %arg8[%c0_20, %c0_21] : memref<128x128xbf16, #tpu.memory_space<vmem>>, vector<128x128xbf16>
    %cst_22 = arith.constant dense<0.000000e+00> : vector<16x128xf32>
    %45 = tpu.matmul %29, %44, %cst_22 {dimension_numbers = #tpu.dot_dimension_numbers<[1], [0], [0], [1], [0, 0, 1, 1], [], []>} : vector<16x128xbf16>, vector<128x128xbf16>, vector<16x128xf32> -> vector<16x128xf32>
    %c0_23 = arith.constant 0 : index
    %c0_24 = arith.constant 0 : index
    %46 = vector.load %arg9[%c0_23, %c0_24] : memref<1x128xf32, #tpu.memory_space<vmem>>, vector<1x128xf32>
    %47 = vector.shape_cast %46 : vector<1x128xf32> to vector<128xf32>
    %48 = vector.shape_cast %47 : vector<128xf32> to vector<1x128xf32>
    %49 = vector.broadcast %48 : vector<1x128xf32> to vector<16x128xf32>
    %50 = arith.addf %45, %49 : vector<16x128xf32>
    %cst_25 = arith.constant 1.250000e-01 : f32
    %51 = vector.broadcast %cst_25 : f32 to vector<16x128xf32>
    %52 = arith.mulf %36, %51 : vector<16x128xf32>
    %53 = vector.extract_strided_slice %52 {offsets = [0, 0], sizes = [16, 64], strides = [1, 1]} : vector<16x128xf32> to vector<16x64xf32>
    %54 = vector.extract_strided_slice %52 {offsets = [0, 64], sizes = [16, 64], strides = [1, 1]} : vector<16x128xf32> to vector<16x64xf32>
    %55 = vector.shape_cast %53 : vector<16x64xf32> to vector<1x16x64xf32>
    %56 = vector.shape_cast %54 : vector<16x64xf32> to vector<1x16x64xf32>
    %57 = tpu.concatenate %55, %56 in 0 : vector<1x16x64xf32>, vector<1x16x64xf32> -> vector<2x16x64xf32>
    %58 = vector.shape_cast %57 : vector<2x16x64xf32> to vector<4x8x64xf32>
    %59 = arith.truncf %58 : vector<4x8x64xf32> to vector<4x8x64xbf16>
    %60 = vector.extract_strided_slice %43 {offsets = [0, 0], sizes = [16, 64], strides = [1, 1]} : vector<16x128xf32> to vector<16x64xf32>
    %61 = vector.extract_strided_slice %43 {offsets = [0, 64], sizes = [16, 64], strides = [1, 1]} : vector<16x128xf32> to vector<16x64xf32>
    %62 = vector.shape_cast %60 : vector<16x64xf32> to vector<1x16x64xf32>
    %63 = vector.shape_cast %61 : vector<16x64xf32> to vector<1x16x64xf32>
    %64 = tpu.concatenate %62, %63 in 0 : vector<1x16x64xf32>, vector<1x16x64xf32> -> vector<2x16x64xf32>
    %65 = vector.shape_cast %64 : vector<2x16x64xf32> to vector<4x8x64xf32>
    %66 = arith.truncf %65 : vector<4x8x64xf32> to vector<4x8x64xbf16>
    %67 = vector.extract_strided_slice %50 {offsets = [0, 0], sizes = [16, 64], strides = [1, 1]} : vector<16x128xf32> to vector<16x64xf32>
    %68 = vector.extract_strided_slice %50 {offsets = [0, 64], sizes = [16, 64], strides = [1, 1]} : vector<16x128xf32> to vector<16x64xf32>
    %69 = vector.shape_cast %67 : vector<16x64xf32> to vector<1x16x64xf32>
    %70 = vector.shape_cast %68 : vector<16x64xf32> to vector<1x16x64xf32>
    %71 = tpu.concatenate %69, %70 in 0 : vector<1x16x64xf32>, vector<1x16x64xf32> -> vector<2x16x64xf32>
    %72 = vector.shape_cast %71 : vector<2x16x64xf32> to vector<4x8x64xf32>
    %73 = arith.truncf %72 : vector<4x8x64xf32> to vector<4x8x64xbf16>
    "tpu.trace_start"() <{level = 10 : i32, message = "bqd,bkd->bqk"}> : () -> ()
    %cst_26 = arith.constant dense<0.000000e+00> : vector<4x8x8xf32>
    %74 = tpu.matmul %59, %66, %cst_26 {dimension_numbers = #tpu.dot_dimension_numbers<[2], [2], [1], [1], [0, 0, 0, 1, 1, 1], [0], [0]>} : vector<4x8x64xbf16>, vector<4x8x64xbf16>, vector<4x8x8xf32> -> vector<4x8x8xf32>
    "tpu.trace_stop"() : () -> ()
    %cst_27 = arith.constant dense<0xFF800000> : vector<4x8xf32>
    %75 = vector.multi_reduction <maximumf>, %74, %cst_27 [2] : vector<4x8x8xf32> to vector<4x8xf32>
    %76 = vector.shape_cast %75 : vector<4x8xf32> to vector<4x8x1xf32>
    %77 = vector.broadcast %76 : vector<4x8x1xf32> to vector<4x8x8xf32>
    %78 = arith.subf %74, %77 : vector<4x8x8xf32>
    %79 = math.exp %78 : vector<4x8x8xf32>
    %cst_28 = arith.constant dense<0.000000e+00> : vector<4x8xf32>
    %80 = vector.multi_reduction <add>, %79, %cst_28 [2] : vector<4x8x8xf32> to vector<4x8xf32>
    %81 = vector.shape_cast %80 : vector<4x8xf32> to vector<4x8x1xf32>
    %82 = tpu.reciprocal %81 {approx = true} : vector<4x8x1xf32> -> vector<4x8x1xf32>
    %83 = vector.broadcast %82 : vector<4x8x1xf32> to vector<4x8x8xf32>
    %84 = arith.mulf %79, %83 : vector<4x8x8xf32>
    %85 = arith.truncf %84 : vector<4x8x8xf32> to vector<4x8x8xbf16>
    "tpu.trace_start"() <{level = 10 : i32, message = "bqk,bkd->bqd"}> : () -> ()
    %cst_29 = arith.constant dense<0.000000e+00> : vector<4x8x64xf32>
    %86 = tpu.matmul %85, %73, %cst_29 {dimension_numbers = #tpu.dot_dimension_numbers<[2], [1], [1], [2], [0, 0, 0, 1, 1, 2], [0], [0]>} : vector<4x8x8xbf16>, vector<4x8x64xbf16>, vector<4x8x64xf32> -> vector<4x8x64xf32>
    "tpu.trace_stop"() : () -> ()
    %87 = vector.shape_cast %86 : vector<4x8x64xf32> to vector<2x16x64xf32>
    %88 = vector.extract_strided_slice %87 {offsets = [0, 0, 0], sizes = [1, 16, 64], strides = [1, 1, 1]} : vector<2x16x64xf32> to vector<1x16x64xf32>
    %89 = vector.shape_cast %88 : vector<1x16x64xf32> to vector<16x64xf32>
    %90 = vector.extract_strided_slice %87 {offsets = [1, 0, 0], sizes = [1, 16, 64], strides = [1, 1, 1]} : vector<2x16x64xf32> to vector<1x16x64xf32>
    %91 = vector.shape_cast %90 : vector<1x16x64xf32> to vector<16x64xf32>
    %92 = tpu.concatenate %89, %91 in 1 : vector<16x64xf32>, vector<16x64xf32> -> vector<16x128xf32>
    %93 = arith.truncf %92 : vector<16x128xf32> to vector<16x128xbf16>
    %c0_30 = arith.constant 0 : index
    %c0_31 = arith.constant 0 : index
    %94 = vector.load %arg10[%c0_30, %c0_31] : memref<128x128xbf16, #tpu.memory_space<vmem>>, vector<128x128xbf16>
    %cst_32 = arith.constant dense<0.000000e+00> : vector<16x128xf32>
    %95 = tpu.matmul %93, %94, %cst_32 {dimension_numbers = #tpu.dot_dimension_numbers<[1], [0], [0], [1], [0, 0, 1, 1], [], []>} : vector<16x128xbf16>, vector<128x128xbf16>, vector<16x128xf32> -> vector<16x128xf32>
    %c0_33 = arith.constant 0 : index
    %c0_34 = arith.constant 0 : index
    %96 = vector.load %arg11[%c0_33, %c0_34] : memref<1x128xf32, #tpu.memory_space<vmem>>, vector<1x128xf32>
    %97 = vector.shape_cast %96 : vector<1x128xf32> to vector<128xf32>
    %98 = vector.shape_cast %97 : vector<128xf32> to vector<1x128xf32>
    %99 = vector.broadcast %98 : vector<1x128xf32> to vector<16x128xf32>
    %100 = arith.addf %95, %99 : vector<16x128xf32>
    %101 = arith.addf %28, %100 : vector<16x128xf32>
    %c0_35 = arith.constant 0 : index
    %c0_36 = arith.constant 0 : index
    %102 = vector.load %arg12[%c0_35, %c0_36] : memref<1x128xf32, #tpu.memory_space<vmem>>, vector<1x128xf32>
    %103 = vector.shape_cast %102 : vector<1x128xf32> to vector<128xf32>
    %c0_37 = arith.constant 0 : index
    %c0_38 = arith.constant 0 : index
    %104 = vector.load %arg13[%c0_37, %c0_38] : memref<1x128xf32, #tpu.memory_space<vmem>>, vector<1x128xf32>
    %105 = vector.shape_cast %104 : vector<1x128xf32> to vector<128xf32>
    %cst_39 = arith.constant dense<0.000000e+00> : vector<16xf32>
    %106 = vector.multi_reduction <add>, %101, %cst_39 [1] : vector<16x128xf32> to vector<16xf32>
    %107 = vector.shape_cast %106 : vector<16xf32> to vector<16x1xf32>
    %cst_40 = arith.constant 1.280000e+02 : f32
    %108 = vector.broadcast %cst_40 : f32 to vector<16x1xf32>
    %109 = arith.divf %107, %108 : vector<16x1xf32>
    %110 = vector.broadcast %109 : vector<16x1xf32> to vector<16x128xf32>
    %111 = arith.subf %101, %110 : vector<16x128xf32>
    %112 = arith.mulf %111, %111 : vector<16x128xf32>
    %cst_41 = arith.constant dense<0.000000e+00> : vector<16xf32>
    %113 = vector.multi_reduction <add>, %112, %cst_41 [1] : vector<16x128xf32> to vector<16xf32>
    %114 = vector.shape_cast %113 : vector<16xf32> to vector<16x1xf32>
    %cst_42 = arith.constant 1.280000e+02 : f32
    %115 = vector.broadcast %cst_42 : f32 to vector<16x1xf32>
    %116 = arith.divf %114, %115 : vector<16x1xf32>
    %cst_43 = arith.constant 9.99999996E-13 : f32
    %117 = vector.broadcast %cst_43 : f32 to vector<16x1xf32>
    %118 = arith.addf %116, %117 : vector<16x1xf32>
    %119 = math.rsqrt %118 : vector<16x1xf32>
    %120 = vector.broadcast %119 : vector<16x1xf32> to vector<16x128xf32>
    %121 = arith.mulf %111, %120 : vector<16x128xf32>
    %122 = vector.shape_cast %103 : vector<128xf32> to vector<1x128xf32>
    %123 = vector.broadcast %122 : vector<1x128xf32> to vector<16x128xf32>
    %124 = arith.mulf %121, %123 : vector<16x128xf32>
    %125 = vector.shape_cast %105 : vector<128xf32> to vector<1x128xf32>
    %126 = vector.broadcast %125 : vector<1x128xf32> to vector<16x128xf32>
    %127 = arith.addf %124, %126 : vector<16x128xf32>
    %128 = arith.truncf %127 : vector<16x128xf32> to vector<16x128xbf16>
    %c0_44 = arith.constant 0 : index
    %c0_45 = arith.constant 0 : index
    %129 = vector.load %arg14[%c0_44, %c0_45] : memref<128x256xbf16, #tpu.memory_space<vmem>>, vector<128x256xbf16>
    %cst_46 = arith.constant dense<0.000000e+00> : vector<16x256xf32>
    %130 = tpu.matmul %128, %129, %cst_46 {dimension_numbers = #tpu.dot_dimension_numbers<[1], [0], [0], [1], [0, 0, 1, 1], [], []>} : vector<16x128xbf16>, vector<128x256xbf16>, vector<16x256xf32> -> vector<16x256xf32>
    %c0_47 = arith.constant 0 : index
    %c0_48 = arith.constant 0 : index
    %131 = vector.load %arg15[%c0_47, %c0_48] : memref<1x256xf32, #tpu.memory_space<vmem>>, vector<1x256xf32>
    %132 = vector.shape_cast %131 : vector<1x256xf32> to vector<256xf32>
    %133 = vector.shape_cast %132 : vector<256xf32> to vector<1x256xf32>
    %134 = vector.broadcast %133 : vector<1x256xf32> to vector<16x256xf32>
    %135 = arith.addf %130, %134 : vector<16x256xf32>
    %136 = arith.mulf %135, %135 : vector<16x256xf32>
    %137 = arith.mulf %135, %136 : vector<16x256xf32>
    %cst_49 = arith.constant 4.471500e-02 : f32
    %138 = vector.broadcast %cst_49 : f32 to vector<16x256xf32>
    %139 = arith.mulf %138, %137 : vector<16x256xf32>
    %140 = arith.addf %135, %139 : vector<16x256xf32>
    %cst_50 = arith.constant 0.797884583 : f32
    %141 = vector.broadcast %cst_50 : f32 to vector<16x256xf32>
    %142 = arith.mulf %141, %140 : vector<16x256xf32>
    %143 = math.tanh %142 : vector<16x256xf32>
    %cst_51 = arith.constant 1.000000e+00 : f32
    %144 = vector.broadcast %cst_51 : f32 to vector<16x256xf32>
    %145 = arith.addf %144, %143 : vector<16x256xf32>
    %cst_52 = arith.constant 5.000000e-01 : f32
    %146 = vector.broadcast %cst_52 : f32 to vector<16x256xf32>
    %147 = arith.mulf %146, %145 : vector<16x256xf32>
    %148 = arith.mulf %135, %147 : vector<16x256xf32>
    %149 = arith.truncf %148 : vector<16x256xf32> to vector<16x256xbf16>
    %c0_53 = arith.constant 0 : index
    %c0_54 = arith.constant 0 : index
    %150 = vector.load %arg16[%c0_53, %c0_54] : memref<256x128xbf16, #tpu.memory_space<vmem>>, vector<256x128xbf16>
    %cst_55 = arith.constant dense<0.000000e+00> : vector<16x128xf32>
    %151 = tpu.matmul %149, %150, %cst_55 {dimension_numbers = #tpu.dot_dimension_numbers<[1], [0], [0], [1], [0, 0, 1, 1], [], []>} : vector<16x256xbf16>, vector<256x128xbf16>, vector<16x128xf32> -> vector<16x128xf32>
    %c0_56 = arith.constant 0 : index
    %c0_57 = arith.constant 0 : index
    %152 = vector.load %arg17[%c0_56, %c0_57] : memref<1x128xf32, #tpu.memory_space<vmem>>, vector<1x128xf32>
    %153 = vector.shape_cast %152 : vector<1x128xf32> to vector<128xf32>
    %154 = vector.shape_cast %153 : vector<128xf32> to vector<1x128xf32>
    %155 = vector.broadcast %154 : vector<1x128xf32> to vector<16x128xf32>
    %156 = arith.addf %151, %155 : vector<16x128xf32>
    %157 = arith.addf %127, %156 : vector<16x128xf32>
    %c0_58 = arith.constant 0 : index
    %c0_59 = arith.constant 0 : index
    %158 = vector.load %arg18[%c0_58, %c0_59] : memref<1x128xf32, #tpu.memory_space<vmem>>, vector<1x128xf32>
    %159 = vector.shape_cast %158 : vector<1x128xf32> to vector<128xf32>
    %c0_60 = arith.constant 0 : index
    %c0_61 = arith.constant 0 : index
    %160 = vector.load %arg19[%c0_60, %c0_61] : memref<1x128xf32, #tpu.memory_space<vmem>>, vector<1x128xf32>
    %161 = vector.shape_cast %160 : vector<1x128xf32> to vector<128xf32>
    %cst_62 = arith.constant dense<0.000000e+00> : vector<16xf32>
    %162 = vector.multi_reduction <add>, %157, %cst_62 [1] : vector<16x128xf32> to vector<16xf32>
    %163 = vector.shape_cast %162 : vector<16xf32> to vector<16x1xf32>
    %cst_63 = arith.constant 1.280000e+02 : f32
    %164 = vector.broadcast %cst_63 : f32 to vector<16x1xf32>
    %165 = arith.divf %163, %164 : vector<16x1xf32>
    %166 = vector.broadcast %165 : vector<16x1xf32> to vector<16x128xf32>
    %167 = arith.subf %157, %166 : vector<16x128xf32>
    %168 = arith.mulf %167, %167 : vector<16x128xf32>
    %cst_64 = arith.constant dense<0.000000e+00> : vector<16xf32>
    %169 = vector.multi_reduction <add>, %168, %cst_64 [1] : vector<16x128xf32> to vector<16xf32>
    %170 = vector.shape_cast %169 : vector<16xf32> to vector<16x1xf32>
    %cst_65 = arith.constant 1.280000e+02 : f32
    %171 = vector.broadcast %cst_65 : f32 to vector<16x1xf32>
    %172 = arith.divf %170, %171 : vector<16x1xf32>
    %cst_66 = arith.constant 9.99999996E-13 : f32
    %173 = vector.broadcast %cst_66 : f32 to vector<16x1xf32>
    %174 = arith.addf %172, %173 : vector<16x1xf32>
    %175 = math.rsqrt %174 : vector<16x1xf32>
    %176 = vector.broadcast %175 : vector<16x1xf32> to vector<16x128xf32>
    %177 = arith.mulf %167, %176 : vector<16x128xf32>
    %178 = vector.shape_cast %159 : vector<128xf32> to vector<1x128xf32>
    %179 = vector.broadcast %178 : vector<1x128xf32> to vector<16x128xf32>
    %180 = arith.mulf %177, %179 : vector<16x128xf32>
    %181 = vector.shape_cast %161 : vector<128xf32> to vector<1x128xf32>
    %182 = vector.broadcast %181 : vector<1x128xf32> to vector<16x128xf32>
    %183 = arith.addf %180, %182 : vector<16x128xf32>
    %184 = vector.shape_cast %183 : vector<16x128xf32> to vector<2x8x128xf32>
    %c0_67 = arith.constant 0 : index
    %c0_68 = arith.constant 0 : index
    %c0_69 = arith.constant 0 : index
    %185 = vector.load %arg20[%c0_67, %c0_68, %c0_69] : memref<2x8x128xf32, #tpu.memory_space<vmem>>, vector<2x8x128xf32>
    tpu.vector_store %arg20[%c0_67, %c0_68, %c0_69], %184 {strides = array<i32>} : memref<2x8x128xf32, #tpu.memory_space<vmem>>, vector<2x8x128xf32>,
    return
  }
  func.func @transform_0(%arg0: i32) -> (i32, i32, i32) {
    %c0_i32 = arith.constant 0 : i32
    %c0_i32_0 = arith.constant 0 : i32
    %c0_i32_1 = arith.constant 0 : i32
    return %arg0, %c0_i32, %c0_i32_0 : i32, i32, i32
  }
  func.func @transform_1(%arg0: i32) -> (i32, i32) {
    %c0_i32 = arith.constant 0 : i32
    %c0_i32_0 = arith.constant 0 : i32
    %c0_i32_1 = arith.constant 0 : i32
    return %c0_i32, %c0_i32_0 : i32, i32
  }
  func.func @transform_2(%arg0: i32) -> (i32, i32) {
    %c0_i32 = arith.constant 0 : i32
    %c0_i32_0 = arith.constant 0 : i32
    %c0_i32_1 = arith.constant 0 : i32
    return %c0_i32, %c0_i32_0 : i32, i32
  }
  func.func @transform_3(%arg0: i32) -> (i32, i32) {
    %c0_i32 = arith.constant 0 : i32
    %c0_i32_0 = arith.constant 0 : i32
    %c0_i32_1 = arith.constant 0 : i32
    return %c0_i32, %c0_i32_0 : i32, i32
  }
  func.func @transform_4(%arg0: i32) -> (i32, i32) {
    %c0_i32 = arith.constant 0 : i32
    %c0_i32_0 = arith.constant 0 : i32
    %c0_i32_1 = arith.constant 0 : i32
    return %c0_i32, %c0_i32_0 : i32, i32
  }
  func.func @transform_5(%arg0: i32) -> (i32, i32) {
    %c0_i32 = arith.constant 0 : i32
    %c0_i32_0 = arith.constant 0 : i32
    %c0_i32_1 = arith.constant 0 : i32
    return %c0_i32, %c0_i32_0 : i32, i32
  }
  func.func @transform_6(%arg0: i32) -> (i32, i32) {
    %c0_i32 = arith.constant 0 : i32
    %c0_i32_0 = arith.constant 0 : i32
    %c0_i32_1 = arith.constant 0 : i32
    return %c0_i32, %c0_i32_0 : i32, i32
  }
  func.func @transform_7(%arg0: i32) -> (i32, i32) {
    %c0_i32 = arith.constant 0 : i32
    %c0_i32_0 = arith.constant 0 : i32
    %c0_i32_1 = arith.constant 0 : i32
    return %c0_i32, %c0_i32_0 : i32, i32
  }
  func.func @transform_8(%arg0: i32) -> (i32, i32) {
    %c0_i32 = arith.constant 0 : i32
    %c0_i32_0 = arith.constant 0 : i32
    %c0_i32_1 = arith.constant 0 : i32
    return %c0_i32, %c0_i32_0 : i32, i32
  }
  func.func @transform_9(%arg0: i32) -> (i32, i32) {
    %c0_i32 = arith.constant 0 : i32
    %c0_i32_0 = arith.constant 0 : i32
    %c0_i32_1 = arith.constant 0 : i32
    return %c0_i32, %c0_i32_0 : i32, i32
  }
  func.func @transform_10(%arg0: i32) -> (i32, i32) {
    %c0_i32 = arith.constant 0 : i32
    %c0_i32_0 = arith.constant 0 : i32
    %c0_i32_1 = arith.constant 0 : i32
    return %c0_i32, %c0_i32_0 : i32, i32
  }
  func.func @transform_11(%arg0: i32) -> (i32, i32) {
    %c0_i32 = arith.constant 0 : i32
    %c0_i32_0 = arith.constant 0 : i32
    %c0_i32_1 = arith.constant 0 : i32
    return %c0_i32, %c0_i32_0 : i32, i32
  }
  func.func @transform_12(%arg0: i32) -> (i32, i32) {
    %c0_i32 = arith.constant 0 : i32
    %c0_i32_0 = arith.constant 0 : i32
    %c0_i32_1 = arith.constant 0 : i32
    return %c0_i32, %c0_i32_0 : i32, i32
  }
  func.func @transform_13(%arg0: i32) -> (i32, i32) {
    %c0_i32 = arith.constant 0 : i32
    %c0_i32_0 = arith.constant 0 : i32
    %c0_i32_1 = arith.constant 0 : i32
    return %c0_i32, %c0_i32_0 : i32, i32
  }
  func.func @transform_14(%arg0: i32) -> (i32, i32) {
    %c0_i32 = arith.constant 0 : i32
    %c0_i32_0 = arith.constant 0 : i32
    %c0_i32_1 = arith.constant 0 : i32
    return %c0_i32, %c0_i32_0 : i32, i32
  }
  func.func @transform_15(%arg0: i32) -> (i32, i32) {
    %c0_i32 = arith.constant 0 : i32
    %c0_i32_0 = arith.constant 0 : i32
    %c0_i32_1 = arith.constant 0 : i32
    return %c0_i32, %c0_i32_0 : i32, i32
  }
  func.func @transform_16(%arg0: i32) -> (i32, i32) {
    %c0_i32 = arith.constant 0 : i32
    %c0_i32_0 = arith.constant 0 : i32
    %c0_i32_1 = arith.constant 0 : i32
    return %c0_i32, %c0_i32_0 : i32, i32
  }
  func.func @transform_17(%arg0: i32) -> (i32, i32) {
    %c0_i32 = arith.constant 0 : i32
    %c0_i32_0 = arith.constant 0 : i32
    %c0_i32_1 = arith.constant 0 : i32
    return %c0_i32, %c0_i32_0 : i32, i32
  }
  func.func @transform_18(%arg0: i32) -> (i32, i32) {
    %c0_i32 = arith.constant 0 : i32
    %c0_i32_0 = arith.constant 0 : i32
    %c0_i32_1 = arith.constant 0 : i32
    return %c0_i32, %c0_i32_0 : i32, i32
  }
  func.func @transform_19(%arg0: i32) -> (i32, i32, i32) {
    %c0_i32 = arith.constant 0 : i32
    %c0_i32_0 = arith.constant 0 : i32
    %c0_i32_1 = arith.constant 0 : i32
    return %arg0, %c0_i32, %c0_i32_0 : i32, i32, i32
  }
}

</mosaic_0001>

<llo_original>
// kernel: tpu_custom_call.1
$region0: #{tpu_custom_call.1}
  #allocation0 [shape = 'u32[]', space=smem, size = 0x4, offset = 0x4, fixed_abs, tag = 'smem constant byte address 0x4 - core index']
  #allocation1 [shape = 'u32[144,128]{1,0:T(1,128)}', space=vmem, size = 0x12000, scoped, tag = 'internal scratch']
  %s0 = inlined_call_operand.hbm [shape: bf16[4,8,128], index: 0, kind: input, shape index: {}]
  %s1 = inlined_call_operand.vmem [shape: f32[1,128], index: 1, kind: input, shape index: {}]
  %s2 = inlined_call_operand.hbm [shape: f32[1,128], index: 2, kind: input, shape index: {}]
  %s3 = inlined_call_operand.hbm [shape: bf16[128,128], index: 3, kind: input, shape index: {}]
  %s4 = inlined_call_operand.vmem [shape: f32[1,128], index: 4, kind: input, shape index: {}]
  %s5 = inlined_call_operand.hbm [shape: bf16[128,128], index: 5, kind: input, shape index: {}]
  %s6 = inlined_call_operand.vmem [shape: f32[1,128], index: 6, kind: input, shape index: {}]
  %s7 = inlined_call_operand.hbm [shape: bf16[128,128], index: 7, kind: input, shape index: {}]
  %s8 = inlined_call_operand.vmem [shape: f32[1,128], index: 8, kind: input, shape index: {}]
  %s9 = inlined_call_operand.hbm [shape: bf16[128,128], index: 9, kind: input, shape index: {}]
  %s10 = inlined_call_operand.vmem [shape: f32[1,128], index: 10, kind: input, shape index: {}]
  %s11 = inlined_call_operand.vmem [shape: f32[1,128], index: 11, kind: input, shape index: {}]
  %s12 = inlined_call_operand.vmem [shape: f32[1,128], index: 12, kind: input, shape index: {}]
  %s13 = inlined_call_operand.hbm [shape: bf16[128,256], index: 13, kind: input, shape index: {}]
  %s14 = inlined_call_operand.vmem [shape: f32[1,256], index: 14, kind: input, shape index: {}]
  %s15 = inlined_call_operand.hbm [shape: bf16[256,128], index: 15, kind: input, shape index: {}]
  %s16 = inlined_call_operand.vmem [shape: f32[1,128], index: 16, kind: input, shape index: {}]
  %s17 = inlined_call_operand.vmem [shape: f32[1,128], index: 17, kind: input, shape index: {}]
  %s18 = inlined_call_operand.vmem [shape: f32[1,128], index: 18, kind: input, shape index: {}]
  %s19 = inlined_call_operand.hbm [shape: f32[4,8,128], index: 19, kind: output, shape index: {}]
  %s20 = sld [smem:[#allocation0]]
  $region141: #{tpu_custom_call.1} parent=0
    _
  %s22 = ssub.s32 1, %s20
  %s23 = scalar_select 0, %s22, %s20
  $region1: #{tpu_custom_call.1} parent=0
    #allocation2 [shape = 'u8[8192]{0}', space=vmem, size = 0x2000, scoped, tag = 'input window, operand 0']
    #allocation3 [shape = 's32[2]{0}', space=sflag, size = 0x8, scoped, tag = 'scoped memory for tpu_custom_call.1']
    #allocation4 [shape = 's32[2]{0}', space=sflag, size = 0x8, scoped, tag = 'scoped memory for tpu_custom_call.1']
    #allocation5 [shape = 'u8[512]{0}', space=vmem, size = 0x400, scoped, tag = 'input window, operand 2, single buffered']
    #allocation6 [shape = 's32[1]{0}', space=sflag, size = 0x4, scoped, tag = 'scoped memory for tpu_custom_call.1']
    #allocation7 [shape = 'u8[32768]{0}', space=vmem, size = 0x8000, scoped, tag = 'input window, operand 3, single buffered']
    #allocation8 [shape = 'u8[32768]{0}', space=vmem, size = 0x8000, scoped, tag = 'input window, operand 5, single buffered']
    #allocation9 [shape = 's32[1]{0}', space=sflag, size = 0x4, scoped, tag = 'scoped memory for tpu_custom_call.1']
    #allocation10 [shape = 'u8[32768]{0}', space=vmem, size = 0x8000, scoped, tag = 'input window, operand 7, single buffered']
    #allocation11 [shape = 'u8[32768]{0}', space=vmem, size = 0x8000, scoped, tag = 'input window, operand 9, single buffered']
    #allocation12 [shape = 's32[1]{0}', space=sflag, size = 0x4, scoped, tag = 'scoped memory for tpu_custom_call.1']
    #allocation13 [shape = 'u8[65536]{0}', space=vmem, size = 0x10000, scoped, tag = 'input window, operand 13, single buffered']
    #allocation14 [shape = 'u8[65536]{0}', space=vmem, size = 0x10000, scoped, tag = 'input window, operand 15, single buffered']
    #allocation15 [shape = 's32[1]{0}', space=sflag, size = 0x4, scoped, tag = 'scoped memory for tpu_custom_call.1']
    #allocation16 [shape = 'u8[16384]{0}', space=vmem, size = 0x4000, scoped, tag = 'output window, operand 0']
    %24 = vsyncpa [#allocation3], 0
    %s25 = scalar_lea.sflag [#allocation3], 1
    %26 = vsyncpa %s25, 0
    %27 = vsyncpa [#allocation6], 0
    %28 = vsyncpa [#allocation9], 0
    %29 = vsyncpa [#allocation12], 0
    %30 = vsyncpa [#allocation15], 0
    %31 = vsyncpa [#allocation4], 0
    %s32 = scalar_lea.sflag [#allocation4], 1
    %33 = vsyncpa %s32, 0
    loop: start=0, step=1, limit=4
    $region2: #{tpu_custom_call.1} parent=1 // loop_pre_header
      _
    $region3: #{tpu_custom_call.1} parent=1 // loop_header
      %s35 = sphi 0, %s39
      %p36 = scmp.ge.s32.totalorder %s35, 4
      %s45 = sphi 0, %s47
      %s48 = sphi 0, %s45
      %s49 = sphi 0, %s48
      %s65 = sphi 0, %s49
      %s69 = sphi 0, %s69
      %s71 = sphi 0, %s69
      %s72 = sphi 0, %s71
      %s86 = sphi 0, %s72
      %s90 = sphi 0, %s90
      %s92 = sphi 0, %s90
      %s93 = sphi 0, %s92
      %s107 = sphi 0, %s93
      %s111 = sphi 0, %s111
      %s113 = sphi 0, %s111
      %s114 = sphi 0, %s113
      %s128 = sphi 0, %s114
      %s132 = sphi 0, %s132
      %s134 = sphi 0, %s132
      %s135 = sphi 0, %s134
      %s149 = sphi 0, %s135
      %s153 = sphi 0, %s153
      %s155 = sphi 0, %s153
      %s156 = sphi 0, %s155
      %s170 = sphi 0, %s156
      %s174 = sphi 0, %s174
      %s176 = sphi 0, %s174
      %s177 = sphi 0, %s176
      %s191 = sphi 0, %s177
      %s195 = sphi 0, %s195
      %s197 = sphi 0, %s195
      %s198 = sphi 0, %s197
      %s212 = sphi 0, %s198
      %s216 = sphi 0, %s216
      %s218 = sphi 0, %s216
      %s219 = sphi 0, %s218
      %s233 = sphi 0, %s219
      %s237 = sphi 0, %s237
      %s239 = sphi 0, %s237
      %s240 = sphi 0, %s239
      %s254 = sphi 0, %s240
      %s258 = sphi 0, %s258
      %s260 = sphi 0, %s258
      %s261 = sphi 0, %s260
      %s275 = sphi 0, %s261
      %s279 = sphi 0, %s279
      %s281 = sphi 0, %s279
      %s282 = sphi 0, %s281
      %s296 = sphi 0, %s282
      %s300 = sphi 0, %s300
      %s302 = sphi 0, %s300
      %s303 = sphi 0, %s302
      %s317 = sphi 0, %s303
      %s321 = sphi 0, %s321
      %s323 = sphi 0, %s321
      %s324 = sphi 0, %s323
      %s338 = sphi 0, %s324
      %s342 = sphi 0, %s342
      %s344 = sphi 0, %s342
      %s345 = sphi 0, %s344
      %s359 = sphi 0, %s345
      %s363 = sphi 0, %s363
      %s365 = sphi 0, %s363
      %s366 = sphi 0, %s365
      %s380 = sphi 0, %s366
      %s384 = sphi 0, %s384
      %s386 = sphi 0, %s384
      %s387 = sphi 0, %s386
      %s401 = sphi 0, %s387
      %s405 = sphi 0, %s405
      %s407 = sphi 0, %s405
      %s408 = sphi 0, %s407
      %s422 = sphi 0, %s408
      %s426 = sphi 0, %s426
      %s428 = sphi 0, %s426
      %s429 = sphi 0, %s428
      %s443 = sphi 0, %s429
      %s449 = sphi 0, %s451
      %s452 = sphi 0, %s449
      %s453 = sphi 0, %s452
      %s469 = sphi 0, %s453
    $region4: #{tpu_custom_call.1} parent=1 // loop_header_branch
      %38 = sbr.rel (%p36) target = $region8
    $region5: #{tpu_custom_call.1} parent=1 // loop_body
      %s40 = ssub.s32 %s35, 1
      %s41 = ssub.s32 %s35, 2
      %s42 = sadd.s32 %s35, 1
      %s43 = ssub.s32 %s35, %s42
      %p44 = scmp.eq.s32.totalorder %s43, 0
      %s46 = sadd.s32 %s45, 1
      %s47 = scalar_select %p44, %s45, %s46
      %p50 = pneg %p44
      %p51 = scmp.eq.s32.totalorder %s35, 1
      %p52 = por %p50, %p51
      %p53 = scmp.ne.s32.totalorder %s45, %s48
      %p54 = scmp.eq.s32.totalorder %s35, 0
      %p55 = por %p53, %p54
      %p56 = scmp.ne.s32.totalorder %s45, %s48
      %p57 = scmp.eq.s32.totalorder %s40, 1
      %p58 = por %p56, %p57
      %p59 = scmp.ne.s32.totalorder %s48, %s49
      %p60 = scmp.eq.s32.totalorder %s40, 0
      %p61 = por %p59, %p60
      %p62 = scmp.ne.s32.totalorder %s48, %s49
      %p63 = scmp.eq.s32.totalorder %s41, 1
      %p64 = por %p62, %p63
      %p66 = scmp.ne.s32.totalorder %s49, %s65
      %p67 = scmp.eq.s32.totalorder %s41, 0
      %p68 = por %p66, %p67
      %s70 = sadd.s32 %s69, 1
      %p73 = scmp.eq.s32.totalorder %s35, 1
      %p74 = scmp.ne.s32.totalorder %s69, %s71
      %p75 = scmp.eq.s32.totalorder %s35, 0
      %p76 = por %p74, %p75
      %p77 = scmp.ne.s32.totalorder %s69, %s71
      %p78 = scmp.eq.s32.totalorder %s40, 1
      %p79 = por %p77, %p78
      %p80 = scmp.ne.s32.totalorder %s71, %s72
      %p81 = scmp.eq.s32.totalorder %s40, 0
      %p82 = por %p80, %p81
      %p83 = scmp.ne.s32.totalorder %s71, %s72
      %p84 = scmp.eq.s32.totalorder %s41, 1
      %p85 = por %p83, %p84
      %p87 = scmp.ne.s32.totalorder %s72, %s86
      %p88 = scmp.eq.s32.totalorder %s41, 0
      %p89 = por %p87, %p88
      %s91 = sadd.s32 %s90, 1
      %p94 = scmp.eq.s32.totalorder %s35, 1
      %p95 = scmp.ne.s32.totalorder %s90, %s92
      %p96 = scmp.eq.s32.totalorder %s35, 0
      %p97 = por %p95, %p96
      %p98 = scmp.ne.s32.totalorder %s90, %s92
      %p99 = scmp.eq.s32.totalorder %s40, 1
      %p100 = por %p98, %p99
      %p101 = scmp.ne.s32.totalorder %s92, %s93
      %p102 = scmp.eq.s32.totalorder %s40, 0
      %p103 = por %p101, %p102
      %p104 = scmp.ne.s32.totalorder %s92, %s93
      %p105 = scmp.eq.s32.totalorder %s41, 1
      %p106 = por %p104, %p105
      %p108 = scmp.ne.s32.totalorder %s93, %s107
      %p109 = scmp.eq.s32.totalorder %s41, 0
      %p110 = por %p108, %p109
      %s112 = sadd.s32 %s111, 1
      %p115 = scmp.eq.s32.totalorder %s35, 1
      %p116 = scmp.ne.s32.totalorder %s111, %s113
      %p117 = scmp.eq.s32.totalorder %s35, 0
      %p118 = por %p116, %p117
      %p119 = scmp.ne.s32.totalorder %s111, %s113
      %p120 = scmp.eq.s32.totalorder %s40, 1
      %p121 = por %p119, %p120
      %p122 = scmp.ne.s32.totalorder %s113, %s114
      %p123 = scmp.eq.s32.totalorder %s40, 0
      %p124 = por %p122, %p123
      %p125 = scmp.ne.s32.totalorder %s113, %s114
      %p126 = scmp.eq.s32.totalorder %s41, 1
      %p127 = por %p125, %p126
      %p129 = scmp.ne.s32.totalorder %s114, %s128
      %p130 = scmp.eq.s32.totalorder %s41, 0
      %p131 = por %p129, %p130
      %s133 = sadd.s32 %s132, 1
      %p136 = scmp.eq.s32.totalorder %s35, 1
      %p137 = scmp.ne.s32.totalorder %s132, %s134
      %p138 = scmp.eq.s32.totalorder %s35, 0
      %p139 = por %p137, %p138
      %p140 = scmp.ne.s32.totalorder %s132, %s134
      %p141 = scmp.eq.s32.totalorder %s40, 1
      %p142 = por %p140, %p141
      %p143 = scmp.ne.s32.totalorder %s134, %s135
      %p144 = scmp.eq.s32.totalorder %s40, 0
      %p145 = por %p143, %p144
      %p146 = scmp.ne.s32.totalorder %s134, %s135
      %p147 = scmp.eq.s32.totalorder %s41, 1
      %p148 = por %p146, %p147
      %p150 = scmp.ne.s32.totalorder %s135, %s149
      %p151 = scmp.eq.s32.totalorder %s41, 0
      %p152 = por %p150, %p151
      %s154 = sadd.s32 %s153, 1
      %p157 = scmp.eq.s32.totalorder %s35, 1
      %p158 = scmp.ne.s32.totalorder %s153, %s155
      %p159 = scmp.eq.s32.totalorder %s35, 0
      %p160 = por %p158, %p159
      %p161 = scmp.ne.s32.totalorder %s153, %s155
      %p162 = scmp.eq.s32.totalorder %s40, 1
      %p163 = por %p161, %p162
      %p164 = scmp.ne.s32.totalorder %s155, %s156
      %p165 = scmp.eq.s32.totalorder %s40, 0
      %p166 = por %p164, %p165
      %p167 = scmp.ne.s32.totalorder %s155, %s156
      %p168 = scmp.eq.s32.totalorder %s41, 1
      %p169 = por %p167, %p168
      %p171 = scmp.ne.s32.totalorder %s156, %s170
      %p172 = scmp.eq.s32.totalorder %s41, 0
      %p173 = por %p171, %p172
      %s175 = sadd.s32 %s174, 1
      %p178 = scmp.eq.s32.totalorder %s35, 1
      %p179 = scmp.ne.s32.totalorder %s174, %s176
      %p180 = scmp.eq.s32.totalorder %s35, 0
      %p181 = por %p179, %p180
      %p182 = scmp.ne.s32.totalorder %s174, %s176
      %p183 = scmp.eq.s32.totalorder %s40, 1
      %p184 = por %p182, %p183
      %p185 = scmp.ne.s32.totalorder %s176, %s177
      %p186 = scmp.eq.s32.totalorder %s40, 0
      %p187 = por %p185, %p186
      %p188 = scmp.ne.s32.totalorder %s176, %s177
      %p189 = scmp.eq.s32.totalorder %s41, 1
      %p190 = por %p188, %p189
      %p192 = scmp.ne.s32.totalorder %s177, %s191
      %p193 = scmp.eq.s32.totalorder %s41, 0
      %p194 = por %p192, %p193
      %s196 = sadd.s32 %s195, 1
      %p199 = scmp.eq.s32.totalorder %s35, 1
      %p200 = scmp.ne.s32.totalorder %s195, %s197
      %p201 = scmp.eq.s32.totalorder %s35, 0
      %p202 = por %p200, %p201
      %p203 = scmp.ne.s32.totalorder %s195, %s197
      %p204 = scmp.eq.s32.totalorder %s40, 1
      %p205 = por %p203, %p204
      %p206 = scmp.ne.s32.totalorder %s197, %s198
      %p207 = scmp.eq.s32.totalorder %s40, 0
      %p208 = por %p206, %p207
      %p209 = scmp.ne.s32.totalorder %s197, %s198
      %p210 = scmp.eq.s32.totalorder %s41, 1
      %p211 = por %p209, %p210
      %p213 = scmp.ne.s32.totalorder %s198, %s212
      %p214 = scmp.eq.s32.totalorder %s41, 0
      %p215 = por %p213, %p214
      %s217 = sadd.s32 %s216, 1
      %p220 = scmp.eq.s32.totalorder %s35, 1
      %p221 = scmp.ne.s32.totalorder %s216, %s218
      %p222 = scmp.eq.s32.totalorder %s35, 0
      %p223 = por %p221, %p222
      %p224 = scmp.ne.s32.totalorder %s216, %s218
      %p225 = scmp.eq.s32.totalorder %s40, 1
      %p226 = por %p224, %p225
      %p227 = scmp.ne.s32.totalorder %s218, %s219
      %p228 = scmp.eq.s32.totalorder %s40, 0
      %p229 = por %p227, %p228
      %p230 = scmp.ne.s32.totalorder %s218, %s219
      %p231 = scmp.eq.s32.totalorder %s41, 1
      %p232 = por %p230, %p231
      %p234 = scmp.ne.s32.totalorder %s219, %s233
      %p235 = scmp.eq.s32.totalorder %s41, 0
      %p236 = por %p234, %p235
      %s238 = sadd.s32 %s237, 1
      %p241 = scmp.eq.s32.totalorder %s35, 1
      %p242 = scmp.ne.s32.totalorder %s237, %s239
      %p243 = scmp.eq.s32.totalorder %s35, 0
      %p244 = por %p242, %p243
      %p245 = scmp.ne.s32.totalorder %s237, %s239
      %p246 = scmp.eq.s32.totalorder %s40, 1
      %p247 = por %p245, %p246
      %p248 = scmp.ne.s32.totalorder %s239, %s240
      %p249 = scmp.eq.s32.totalorder %s40, 0
      %p250 = por %p248, %p249
      %p251 = scmp.ne.s32.totalorder %s239, %s240
      %p252 = scmp.eq.s32.totalorder %s41, 1
      %p253 = por %p251, %p252
      %p255 = scmp.ne.s32.totalorder %s240, %s254
      %p256 = scmp.eq.s32.totalorder %s41, 0
      %p257 = por %p255, %p256
      %s259 = sadd.s32 %s258, 1
      %p262 = scmp.eq.s32.totalorder %s35, 1
      %p263 = scmp.ne.s32.totalorder %s258, %s260
      %p264 = scmp.eq.s32.totalorder %s35, 0
      %p265 = por %p263, %p264
      %p266 = scmp.ne.s32.totalorder %s258, %s260
      %p267 = scmp.eq.s32.totalorder %s40, 1
      %p268 = por %p266, %p267
      %p269 = scmp.ne.s32.totalorder %s260, %s261
      %p270 = scmp.eq.s32.totalorder %s40, 0
      %p271 = por %p269, %p270
      %p272 = scmp.ne.s32.totalorder %s260, %s261
      %p273 = scmp.eq.s32.totalorder %s41, 1
      %p274 = por %p272, %p273
      %p276 = scmp.ne.s32.totalorder %s261, %s275
      %p277 = scmp.eq.s32.totalorder %s41, 0
      %p278 = por %p276, %p277
      %s280 = sadd.s32 %s279, 1
      %p283 = scmp.eq.s32.totalorder %s35, 1
      %p284 = scmp.ne.s32.totalorder %s279, %s281
      %p285 = scmp.eq.s32.totalorder %s35, 0
      %p286 = por %p284, %p285
      %p287 = scmp.ne.s32.totalorder %s279, %s281
      %p288 = scmp.eq.s32.totalorder %s40, 1
      %p289 = por %p287, %p288
      %p290 = scmp.ne.s32.totalorder %s281, %s282
      %p291 = scmp.eq.s32.totalorder %s40, 0
      %p292 = por %p290, %p291
      %p293 = scmp.ne.s32.totalorder %s281, %s282
      %p294 = scmp.eq.s32.totalorder %s41, 1
      %p295 = por %p293, %p294
      %p297 = scmp.ne.s32.totalorder %s282, %s296
      %p298 = scmp.eq.s32.totalorder %s41, 0
      %p299 = por %p297, %p298
      %s301 = sadd.s32 %s300, 1
      %p304 = scmp.eq.s32.totalorder %s35, 1
      %p305 = scmp.ne.s32.totalorder %s300, %s302
      %p306 = scmp.eq.s32.totalorder %s35, 0
      %p307 = por %p305, %p306
      %p308 = scmp.ne.s32.totalorder %s300, %s302
      %p309 = scmp.eq.s32.totalorder %s40, 1
      %p310 = por %p308, %p309
      %p311 = scmp.ne.s32.totalorder %s302, %s303
      %p312 = scmp.eq.s32.totalorder %s40, 0
      %p313 = por %p311, %p312
      %p314 = scmp.ne.s32.totalorder %s302, %s303
      %p315 = scmp.eq.s32.totalorder %s41, 1
      %p316 = por %p314, %p315
      %p318 = scmp.ne.s32.totalorder %s303, %s317
      %p319 = scmp.eq.s32.totalorder %s41, 0
      %p320 = por %p318, %p319
      %s322 = sadd.s32 %s321, 1
      %p325 = scmp.eq.s32.totalorder %s35, 1
      %p326 = scmp.ne.s32.totalorder %s321, %s323
      %p327 = scmp.eq.s32.totalorder %s35, 0
      %p328 = por %p326, %p327
      %p329 = scmp.ne.s32.totalorder %s321, %s323
      %p330 = scmp.eq.s32.totalorder %s40, 1
      %p331 = por %p329, %p330
      %p332 = scmp.ne.s32.totalorder %s323, %s324
      %p333 = scmp.eq.s32.totalorder %s40, 0
      %p334 = por %p332, %p333
      %p335 = scmp.ne.s32.totalorder %s323, %s324
      %p336 = scmp.eq.s32.totalorder %s41, 1
      %p337 = por %p335, %p336
      %p339 = scmp.ne.s32.totalorder %s324, %s338
      %p340 = scmp.eq.s32.totalorder %s41, 0
      %p341 = por %p339, %p340
      %s343 = sadd.s32 %s342, 1
      %p346 = scmp.eq.s32.totalorder %s35, 1
      %p347 = scmp.ne.s32.totalorder %s342, %s344
      %p348 = scmp.eq.s32.totalorder %s35, 0
      %p349 = por %p347, %p348
      %p350 = scmp.ne.s32.totalorder %s342, %s344
      %p351 = scmp.eq.s32.totalorder %s40, 1
      %p352 = por %p350, %p351
      %p353 = scmp.ne.s32.totalorder %s344, %s345
      %p354 = scmp.eq.s32.totalorder %s40, 0
      %p355 = por %p353, %p354
      %p356 = scmp.ne.s32.totalorder %s344, %s345
      %p357 = scmp.eq.s32.totalorder %s41, 1
      %p358 = por %p356, %p357
      %p360 = scmp.ne.s32.totalorder %s345, %s359
      %p361 = scmp.eq.s32.totalorder %s41, 0
      %p362 = por %p360, %p361
      %s364 = sadd.s32 %s363, 1
      %p367 = scmp.eq.s32.totalorder %s35, 1
      %p368 = scmp.ne.s32.totalorder %s363, %s365
      %p369 = scmp.eq.s32.totalorder %s35, 0
      %p370 = por %p368, %p369
      %p371 = scmp.ne.s32.totalorder %s363, %s365
      %p372 = scmp.eq.s32.totalorder %s40, 1
      %p373 = por %p371, %p372
      %p374 = scmp.ne.s32.totalorder %s365, %s366
      %p375 = scmp.eq.s32.totalorder %s40, 0
      %p376 = por %p374, %p375
      %p377 = scmp.ne.s32.totalorder %s365, %s366
      %p378 = scmp.eq.s32.totalorder %s41, 1
      %p379 = por %p377, %p378
      %p381 = scmp.ne.s32.totalorder %s366, %s380
      %p382 = scmp.eq.s32.totalorder %s41, 0
      %p383 = por %p381, %p382
      %s385 = sadd.s32 %s384, 1
      %p388 = scmp.eq.s32.totalorder %s35, 1
      %p389 = scmp.ne.s32.totalorder %s384, %s386
      %p390 = scmp.eq.s32.totalorder %s35, 0
      %p391 = por %p389, %p390
      %p392 = scmp.ne.s32.totalorder %s384, %s386
      %p393 = scmp.eq.s32.totalorder %s40, 1
      %p394 = por %p392, %p393
      %p395 = scmp.ne.s32.totalorder %s386, %s387
      %p396 = scmp.eq.s32.totalorder %s40, 0
      %p397 = por %p395, %p396
      %p398 = scmp.ne.s32.totalorder %s386, %s387
      %p399 = scmp.eq.s32.totalorder %s41, 1
      %p400 = por %p398, %p399
      %p402 = scmp.ne.s32.totalorder %s387, %s401
      %p403 = scmp.eq.s32.totalorder %s41, 0
      %p404 = por %p402, %p403
      %s406 = sadd.s32 %s405, 1
      %p409 = scmp.eq.s32.totalorder %s35, 1
      %p410 = scmp.ne.s32.totalorder %s405, %s407
      %p411 = scmp.eq.s32.totalorder %s35, 0
      %p412 = por %p410, %p411
      %p413 = scmp.ne.s32.totalorder %s405, %s407
      %p414 = scmp.eq.s32.totalorder %s40, 1
      %p415 = por %p413, %p414
      %p416 = scmp.ne.s32.totalorder %s407, %s408
      %p417 = scmp.eq.s32.totalorder %s40, 0
      %p418 = por %p416, %p417
      %p419 = scmp.ne.s32.totalorder %s407, %s408
      %p420 = scmp.eq.s32.totalorder %s41, 1
      %p421 = por %p419, %p420
      %p423 = scmp.ne.s32.totalorder %s408, %s422
      %p424 = scmp.eq.s32.totalorder %s41, 0
      %p425 = por %p423, %p424
      %s427 = sadd.s32 %s426, 1
      %p430 = scmp.eq.s32.totalorder %s35, 1
      %p431 = scmp.ne.s32.totalorder %s426, %s428
      %p432 = scmp.eq.s32.totalorder %s35, 0
      %p433 = por %p431, %p432
      %p434 = scmp.ne.s32.totalorder %s426, %s428
      %p435 = scmp.eq.s32.totalorder %s40, 1
      %p436 = por %p434, %p435
      %p437 = scmp.ne.s32.totalorder %s428, %s429
      %p438 = scmp.eq.s32.totalorder %s40, 0
      %p439 = por %p437, %p438
      %p440 = scmp.ne.s32.totalorder %s428, %s429
      %p441 = scmp.eq.s32.totalorder %s41, 1
      %p442 = por %p440, %p441
      %p444 = scmp.ne.s32.totalorder %s429, %s443
      %p445 = scmp.eq.s32.totalorder %s41, 0
      %p446 = por %p444, %p445
      %s447 = ssub.s32 %s35, %s42
      %p448 = scmp.eq.s32.totalorder %s447, 0
      %s450 = sadd.s32 %s449, 1
      %s451 = scalar_select %p448, %s449, %s450
      %p454 = pneg %p448
      %p455 = scmp.eq.s32.totalorder %s35, 1
      %p456 = por %p454, %p455
      %p457 = scmp.ne.s32.totalorder %s449, %s452
      %p458 = scmp.eq.s32.totalorder %s35, 0
      %p459 = por %p457, %p458
      %p460 = scmp.ne.s32.totalorder %s449, %s452
      %p461 = scmp.eq.s32.totalorder %s40, 1
      %p462 = por %p460, %p461
      %p463 = scmp.ne.s32.totalorder %s452, %s453
      %p464 = scmp.eq.s32.totalorder %s40, 0
      %p465 = por %p463, %p464
      %p466 = scmp.ne.s32.totalorder %s452, %s453
      %p467 = scmp.eq.s32.totalorder %s41, 1
      %p468 = por %p466, %p467
      %p470 = scmp.ne.s32.totalorder %s453, %s469
      %p471 = scmp.eq.s32.totalorder %s41, 0
      %p472 = por %p470, %p471
      %p473 = scmp.le.s32.totalorder 1, %s35
      %p474 = scmp.lt.s32.totalorder %s35, 3
      %p475 = pnand %p473, %p474
      %p476 = pneg %p475
      // Predicated region
      $region9: #{tpu_custom_call.1} parent=5 // pred_check
        _
      $region10: #{tpu_custom_call.1} parent=5 // pred_check_branch
        %478 = sbr.rel (%p475) target = $region12
      $region11: #{tpu_custom_call.1} parent=5 // pred_region
        %s479 = ssub.s32 %s35, 1
        // Predicated region
        $region13: #{tpu_custom_call.1} parent=11 // pred_check
          %p480 = pneg %p82
        $region14: #{tpu_custom_call.1} parent=11 // pred_check_branch
          %482 = sbr.rel (%p480) target = $region16
        $region15: #{tpu_custom_call.1} parent=11 // pred_region
          _
        $region16: #{tpu_custom_call.1} parent=11 // pred_fallthru
          _
        // Predicated region
        $region17: #{tpu_custom_call.1} parent=11 // pred_check
          %p483 = pneg %p103
        $region18: #{tpu_custom_call.1} parent=11 // pred_check_branch
          %485 = sbr.rel (%p483) target = $region20
        $region19: #{tpu_custom_call.1} parent=11 // pred_region
          %s487 = ssub.s32 16, 16
          %488 = vsyncadd [#allocation6], %s487
          %s490 = sshll.u32 [#allocation5], 4
          %s491 = int_to_ptr.vmem [resolvable:$true] %s490
          %493 = dma.hbm_to_vmem [thread:$0]  %s2, 16, %s491, [#allocation6]
        $region20: #{tpu_custom_call.1} parent=11 // pred_fallthru
          _
        // Predicated region
        $region21: #{tpu_custom_call.1} parent=11 // pred_check
          %p494 = pneg %p124
        $region22: #{tpu_custom_call.1} parent=11 // pred_check_branch
          %496 = sbr.rel (%p494) target = $region24
        $region23: #{tpu_custom_call.1} parent=11 // pred_region
          %s498 = ssub.s32 1024, 1024
          %499 = vsyncadd [#allocation6], %s498
          %s500 = sshll.u32 [#allocation7], 4
          %s501 = int_to_ptr.vmem [resolvable:$true] %s500
          %506 = dma.hbm_to_vmem [thread:$0]  %s3, 1024, %s501, [#allocation6], 64, 64, 4
        $region24: #{tpu_custom_call.1} parent=11 // pred_fallthru
          _
        // Predicated region
        $region25: #{tpu_custom_call.1} parent=11 // pred_check
          %p507 = pneg %p145
        $region26: #{tpu_custom_call.1} parent=11 // pred_check_branch
          %509 = sbr.rel (%p507) target = $region28
        $region27: #{tpu_custom_call.1} parent=11 // pred_region
          _
        $region28: #{tpu_custom_call.1} parent=11 // pred_fallthru
          _
        // Predicated region
        $region29: #{tpu_custom_call.1} parent=11 // pred_check
          %p510 = pneg %p166
        $region30: #{tpu_custom_call.1} parent=11 // pred_check_branch
          %512 = sbr.rel (%p510) target = $region32
        $region31: #{tpu_custom_call.1} parent=11 // pred_region
          %s514 = ssub.s32 1024, 1024
          %515 = vsyncadd [#allocation9], %s514
          %s516 = sshll.u32 [#allocation8], 4
          %s517 = int_to_ptr.vmem [resolvable:$true] %s516
          %522 = dma.hbm_to_vmem [thread:$0]  %s5, 1024, %s517, [#allocation9], 64, 64, 4
        $region32: #{tpu_custom_call.1} parent=11 // pred_fallthru
          _
        // Predicated region
        $region33: #{tpu_custom_call.1} parent=11 // pred_check
          %p523 = pneg %p187
        $region34: #{tpu_custom_call.1} parent=11 // pred_check_branch
          %525 = sbr.rel (%p523) target = $region36
        $region35: #{tpu_custom_call.1} parent=11 // pred_region
          _
        $region36: #{tpu_custom_call.1} parent=11 // pred_fallthru
          _
        // Predicated region
        $region37: #{tpu_custom_call.1} parent=11 // pred_check
          %p526 = pneg %p208
        $region38: #{tpu_custom_call.1} parent=11 // pred_check_branch
          %528 = sbr.rel (%p526) target = $region40
        $region39: #{tpu_custom_call.1} parent=11 // pred_region
          %s530 = ssub.s32 1024, 1024
          %531 = vsyncadd [#allocation9], %s530
          %s532 = sshll.u32 [#allocation10], 4
          %s533 = int_to_ptr.vmem [resolvable:$true] %s532
          %538 = dma.hbm_to_vmem [thread:$0]  %s7, 1024, %s533, [#allocation9], 64, 64, 4
        $region40: #{tpu_custom_call.1} parent=11 // pred_fallthru
          _
        // Predicated region
        $region41: #{tpu_custom_call.1} parent=11 // pred_check
          %p539 = pneg %p229
        $region42: #{tpu_custom_call.1} parent=11 // pred_check_branch
          %541 = sbr.rel (%p539) target = $region44
        $region43: #{tpu_custom_call.1} parent=11 // pred_region
          _
        $region44: #{tpu_custom_call.1} parent=11 // pred_fallthru
          _
        // Predicated region
        $region45: #{tpu_custom_call.1} parent=11 // pred_check
          %p542 = pneg %p250
        $region46: #{tpu_custom_call.1} parent=11 // pred_check_branch
          %544 = sbr.rel (%p542) target = $region48
        $region47: #{tpu_custom_call.1} parent=11 // pred_region
          %s546 = ssub.s32 1024, 1024
          %547 = vsyncadd [#allocation12], %s546
          %s548 = sshll.u32 [#allocation11], 4
          %s549 = int_to_ptr.vmem [resolvable:$true] %s548
          %554 = dma.hbm_to_vmem [thread:$0]  %s9, 1024, %s549, [#allocation12], 64, 64, 4
        $region48: #{tpu_custom_call.1} parent=11 // pred_fallthru
          _
        // Predicated region
        $region49: #{tpu_custom_call.1} parent=11 // pred_check
          %p555 = pneg %p271
        $region50: #{tpu_custom_call.1} parent=11 // pred_check_branch
          %557 = sbr.rel (%p555) target = $region52
        $region51: #{tpu_custom_call.1} parent=11 // pred_region
          _
        $region52: #{tpu_custom_call.1} parent=11 // pred_fallthru
          _
        // Predicated region
        $region53: #{tpu_custom_call.1} parent=11 // pred_check
          %p558 = pneg %p292
        $region54: #{tpu_custom_call.1} parent=11 // pred_check_branch
          %560 = sbr.rel (%p558) target = $region56
        $region55: #{tpu_custom_call.1} parent=11 // pred_region
          _
        $region56: #{tpu_custom_call.1} parent=11 // pred_fallthru
          _
        // Predicated region
        $region57: #{tpu_custom_call.1} parent=11 // pred_check
          %p561 = pneg %p313
        $region58: #{tpu_custom_call.1} parent=11 // pred_check_branch
          %563 = sbr.rel (%p561) target = $region60
        $region59: #{tpu_custom_call.1} parent=11 // pred_region
          _
        $region60: #{tpu_custom_call.1} parent=11 // pred_fallthru
          _
        // Predicated region
        $region61: #{tpu_custom_call.1} parent=11 // pred_check
          %p564 = pneg %p334
        $region62: #{tpu_custom_call.1} parent=11 // pred_check_branch
          %566 = sbr.rel (%p564) target = $region64
        $region63: #{tpu_custom_call.1} parent=11 // pred_region
          %s568 = ssub.s32 2048, 2048
          %569 = vsyncadd [#allocation12], %s568
          %s570 = sshll.u32 [#allocation13], 4
          %s571 = int_to_ptr.vmem [resolvable:$true] %s570
          %576 = dma.hbm_to_vmem [thread:$0]  %s13, 2048, %s571, [#allocation12], 128, 128, 8
        $region64: #{tpu_custom_call.1} parent=11 // pred_fallthru
          _
        // Predicated region
        $region65: #{tpu_custom_call.1} parent=11 // pred_check
          %p577 = pneg %p355
        $region66: #{tpu_custom_call.1} parent=11 // pred_check_branch
          %579 = sbr.rel (%p577) target = $region68
        $region67: #{tpu_custom_call.1} parent=11 // pred_region
          _
        $region68: #{tpu_custom_call.1} parent=11 // pred_fallthru
          _
        // Predicated region
        $region69: #{tpu_custom_call.1} parent=11 // pred_check
          %p580 = pneg %p376
        $region70: #{tpu_custom_call.1} parent=11 // pred_check_branch
          %582 = sbr.rel (%p580) target = $region72
        $region71: #{tpu_custom_call.1} parent=11 // pred_region
          %s584 = ssub.s32 2048, 2048
          %585 = vsyncadd [#allocation15], %s584
          %s586 = sshll.u32 [#allocation14], 4
          %s587 = int_to_ptr.vmem [resolvable:$true] %s586
          %592 = dma.hbm_to_vmem [thread:$0]  %s15, 2048, %s587, [#allocation15], 64, 64, 4
        $region72: #{tpu_custom_call.1} parent=11 // pred_fallthru
          _
        // Predicated region
        $region73: #{tpu_custom_call.1} parent=11 // pred_check
          %p593 = pneg %p397
        $region74: #{tpu_custom_call.1} parent=11 // pred_check_branch
          %595 = sbr.rel (%p593) target = $region76
        $region75: #{tpu_custom_call.1} parent=11 // pred_region
          _
        $region76: #{tpu_custom_call.1} parent=11 // pred_fallthru
          _
        // Predicated region
        $region77: #{tpu_custom_call.1} parent=11 // pred_check
          %p596 = pneg %p418
        $region78: #{tpu_custom_call.1} parent=11 // pred_check_branch
          %598 = sbr.rel (%p596) target = $region80
        $region79: #{tpu_custom_call.1} parent=11 // pred_region
          _
        $region80: #{tpu_custom_call.1} parent=11 // pred_fallthru
          _
        // Predicated region
        $region81: #{tpu_custom_call.1} parent=11 // pred_check
          %p599 = pneg %p439
        $region82: #{tpu_custom_call.1} parent=11 // pred_check_branch
          %601 = sbr.rel (%p599) target = $region84
        $region83: #{tpu_custom_call.1} parent=11 // pred_region
          _
        $region84: #{tpu_custom_call.1} parent=11 // pred_fallthru
          _
      $region12: #{tpu_custom_call.1} parent=5 // pred_fallthru
        _
      %p602 = scmp.lt.s32.totalorder %s35, 2
      // Predicated region
      $region85: #{tpu_custom_call.1} parent=5 // pred_check
        %p603 = pneg %p602
      $region86: #{tpu_custom_call.1} parent=5 // pred_check_branch
        %605 = sbr.rel (%p603) target = $region88
      $region87: #{tpu_custom_call.1} parent=5 // pred_region
        // Predicated region
        $region89: #{tpu_custom_call.1} parent=87 // pred_check
          %p606 = pneg %p55
        $region90: #{tpu_custom_call.1} parent=87 // pred_check_branch
          %608 = sbr.rel (%p606) target = $region92
        $region91: #{tpu_custom_call.1} parent=87 // pred_region
          %s609 = sand.u32 %s45, 1
          %s610 = scalar_lea.sflag [#allocation3], %s609
          %s611 = sand.u32 %s45, 1
          %s612 = smul.addr %s611, 8
          %s613 = scalar_lea.vmem [#allocation2], %s612
          %s614 = smul.u32 2, %s35
          %s616 = ssub.s32 128, 128
          %617 = vsyncadd %s610, %s616
          %s618 = smul.addr %s614, 64
          %s619 = scalar_lea.hbm %s0, %s618
          %s620 = sshll.u32 %s613, 4
          %s621 = int_to_ptr.vmem [resolvable:$true] %s620
          %626 = dma.hbm_to_vmem [thread:$0]  %s619, 128, %s621, %s610, 64, 64, 4
        $region92: #{tpu_custom_call.1} parent=87 // pred_fallthru
          _
      $region88: #{tpu_custom_call.1} parent=5 // pred_fallthru
        _
      %p627 = scmp.le.s32.totalorder 1, %s35
      %p628 = scmp.lt.s32.totalorder %s35, 3
      %p629 = pnand %p627, %p628
      %p630 = pneg %p629
      // Predicated region
      $region93: #{tpu_custom_call.1} parent=5 // pred_check
        _
      $region94: #{tpu_custom_call.1} parent=5 // pred_check_branch
        %632 = sbr.rel (%p629) target = $region96
      $region95: #{tpu_custom_call.1} parent=5 // pred_region
        %s633 = ssub.s32 %s35, 1
        %s634 = sand.u32 %s48, 1
        %s635 = scalar_lea.sflag [#allocation3], %s634
        %s636 = sand.u32 %s48, 1
        %s637 = smul.addr %s636, 8
        %s638 = scalar_lea.vmem [#allocation2], %s637
        // Predicated region
        $region97: #{tpu_custom_call.1} parent=95 // pred_check
          %p639 = pneg %p61
        $region98: #{tpu_custom_call.1} parent=95 // pred_check_branch
          %641 = sbr.rel (%p639) target = $region100
        $region99: #{tpu_custom_call.1} parent=95 // pred_region
          %642 = dma.done %s635, 128
        $region100: #{tpu_custom_call.1} parent=95 // pred_fallthru
          _
        // Predicated region
        $region101: #{tpu_custom_call.1} parent=95 // pred_check
          %p643 = pneg %p103
        $region102: #{tpu_custom_call.1} parent=95 // pred_check_branch
          %645 = sbr.rel (%p643) target = $region104
        $region103: #{tpu_custom_call.1} parent=95 // pred_region
          %646 = dma.done [#allocation6], 16
        $region104: #{tpu_custom_call.1} parent=95 // pred_fallthru
          _
        // Predicated region
        $region105: #{tpu_custom_call.1} parent=95 // pred_check
          %p647 = pneg %p124
        $region106: #{tpu_custom_call.1} parent=95 // pred_check_branch
          %649 = sbr.rel (%p647) target = $region108
        $region107: #{tpu_custom_call.1} parent=95 // pred_region
          %650 = dma.done [#allocation6], 1024
        $region108: #{tpu_custom_call.1} parent=95 // pred_fallthru
          _
        // Predicated region
        $region109: #{tpu_custom_call.1} parent=95 // pred_check
          %p651 = pneg %p166
        $region110: #{tpu_custom_call.1} parent=95 // pred_check_branch
          %653 = sbr.rel (%p651) target = $region112
        $region111: #{tpu_custom_call.1} parent=95 // pred_region
          %654 = dma.done [#allocation9], 1024
        $region112: #{tpu_custom_call.1} parent=95 // pred_fallthru
          _
        // Predicated region
        $region113: #{tpu_custom_call.1} parent=95 // pred_check
          %p655 = pneg %p208
        $region114: #{tpu_custom_call.1} parent=95 // pred_check_branch
          %657 = sbr.rel (%p655) target = $region116
        $region115: #{tpu_custom_call.1} parent=95 // pred_region
          %658 = dma.done [#allocation9], 1024
        $region116: #{tpu_custom_call.1} parent=95 // pred_fallthru
          _
        // Predicated region
        $region117: #{tpu_custom_call.1} parent=95 // pred_check
          %p659 = pneg %p250
        $region118: #{tpu_custom_call.1} parent=95 // pred_check_branch
          %661 = sbr.rel (%p659) target = $region120
        $region119: #{tpu_custom_call.1} parent=95 // pred_region
          %662 = dma.done [#allocation12], 1024
        $region120: #{tpu_custom_call.1} parent=95 // pred_fallthru
          _
        // Predicated region
        $region121: #{tpu_custom_call.1} parent=95 // pred_check
          %p663 = pneg %p334
        $region122: #{tpu_custom_call.1} parent=95 // pred_check_branch
          %665 = sbr.rel (%p663) target = $region124
        $region123: #{tpu_custom_call.1} parent=95 // pred_region
          %666 = dma.done [#allocation12], 2048
        $region124: #{tpu_custom_call.1} parent=95 // pred_fallthru
          _
        // Predicated region
        $region125: #{tpu_custom_call.1} parent=95 // pred_check
          %p667 = pneg %p376
        $region126: #{tpu_custom_call.1} parent=95 // pred_check_branch
          %669 = sbr.rel (%p667) target = $region128
        $region127: #{tpu_custom_call.1} parent=95 // pred_region
          %670 = dma.done [#allocation15], 2048
        $region128: #{tpu_custom_call.1} parent=95 // pred_fallthru
          _
        %s671 = sand.u32 %s48, 1
        %s672 = scalar_lea.sflag [#allocation3], %s671
        %s673 = sand.u32 %s48, 1
        %s674 = smul.addr %s673, 8
        %s675 = scalar_lea.vmem [#allocation2], %s674
        %p676 = pneg %p61
        %p677 = pneg %p58
        %p678 = pneg %p82
        %p679 = pneg %p79
        %p680 = pneg %p103
        %p681 = pneg %p100
        %p682 = pneg %p124
        %p683 = pneg %p121
        %p684 = pneg %p145
        %p685 = pneg %p142
        %p686 = pneg %p166
        %p687 = pneg %p163
        %p688 = pneg %p187
        %p689 = pneg %p184
        %p690 = pneg %p208
        %p691 = pneg %p205
        %p692 = pneg %p229
        %p693 = pneg %p226
        %p694 = pneg %p250
        %p695 = pneg %p247
        %p696 = pneg %p271
        %p697 = pneg %p268
        %p698 = pneg %p292
        %p699 = pneg %p289
        %p700 = pneg %p313
        %p701 = pneg %p310
        %p702 = pneg %p334
        %p703 = pneg %p331
        %p704 = pneg %p355
        %p705 = pneg %p352
        %p706 = pneg %p376
        %p707 = pneg %p373
        %p708 = pneg %p397
        %p709 = pneg %p394
        %p710 = pneg %p418
        %p711 = pneg %p415
        %p712 = pneg %p439
        %p713 = pneg %p436
        %p714 = pneg %p465
        %p715 = pneg %p462
        %s716 = sand.u32 %s452, 1
        %s717 = scalar_lea.sflag [#allocation4], %s716
        %s718 = sand.u32 %s452, 1
        %s719 = smul.addr %s718, 16
        %s720 = scalar_lea.vmem [#allocation16], %s719
        %s721 = smul.u32 2, %s40
        %s722 = smul.u32 2, %s40
        %v724 = vld [vmem:[%s638] sm:$0xf]
        %v725 = vld [vmem:[%s638 + $0x4] sm:$0xf]
        %v726 = vunpack.c.l.bf16 %v724
        %v727 = vunpack.c.l.bf16 %v725
        %v728 = vld [vmem:[%s1] sm:$0x1]
        %v729 = vld [vmem:[#allocation5] sm:$0x1]
        %730 = vadd.xlane.f32.xlu0 %v726
        %v731 = vpop.xlane.xlu0 %730
        %732 = vadd.xlane.f32.xlu0 %v727
        %v733 = vpop.xlane.xlu0 %732
        %v734 = vrcp.pop 128.0
        %v735 = vmul.f32 %v731, %v734
        %v736 = vmul.f32 %v733, %v734
        %v737 = vsub.f32 %v726, %v735
        %v738 = vsub.f32 %v727, %v736
        %v739 = vmul.f32 %v737, %v737
        %v740 = vmul.f32 %v738, %v738
        %741 = vadd.xlane.f32.xlu0 %v739
        %v742 = vpop.xlane.xlu0 %741
        %743 = vadd.xlane.f32.xlu0 %v740
        %v744 = vpop.xlane.xlu0 %743
        %v745 = vmul.f32 %v742, %v734
        %v746 = vmul.f32 %v744, %v734
        %v747 = vadd.f32 %v745, 1e-12
        %v748 = vadd.f32 %v746, 1e-12
        %v749 = vrsqrt.pop %v747
        %v750 = vrsqrt.pop %v748
        %v751 = vmul.f32 %v737, %v749
        %v752 = vmul.f32 %v738, %v750
        %v754 = vlaneseq
        %v755 = vshrl.u32 %v754, 7
        %v756 = vsub.s32 0, %v755
        %v757 = vrot.slane %v728, %v756
        %v759 = vmul.f32 %v751, %v757
        %v760 = vmul.f32 %v752, %v757
        %v762 = vlaneseq
        %v763 = vshrl.u32 %v762, 7
        %v764 = vsub.s32 0, %v763
        %v765 = vrot.slane %v729, %v764
        %v767 = vadd.f32 %v759, %v765
        %v768 = vadd.f32 %v760, %v765
        %v769 = vpack.c.bf16 %v768, %v767
        %v770 = vld [vmem:[#allocation7] sm:$0xf]
        %v771 = vld [vmem:[#allocation7 + $0x4] sm:$0xf]
        %v772 = vld [vmem:[#allocation7 + $0x8] sm:$0xf]
        %v773 = vld [vmem:[#allocation7 + $0xc] sm:$0xf]
        %v774 = vld [vmem:[#allocation7 + $0x10] sm:$0xf]
        %v775 = vld [vmem:[#allocation7 + $0x14] sm:$0xf]
        %v776 = vld [vmem:[#allocation7 + $0x18] sm:$0xf]
        %v777 = vld [vmem:[#allocation7 + $0x1c] sm:$0xf]
        %v778 = vld [vmem:[#allocation7 + $0x20] sm:$0xf]
        %v779 = vld [vmem:[#allocation7 + $0x24] sm:$0xf]
        %v780 = vld [vmem:[#allocation7 + $0x28] sm:$0xf]
        %v781 = vld [vmem:[#allocation7 + $0x2c] sm:$0xf]
        %v782 = vld [vmem:[#allocation7 + $0x30] sm:$0xf]
        %v783 = vld [vmem:[#allocation7 + $0x34] sm:$0xf]
        %v784 = vld [vmem:[#allocation7 + $0x38] sm:$0xf]
        %v785 = vld [vmem:[#allocation7 + $0x3c] sm:$0xf]
        %v786 = vld [vmem:[%s4] sm:$0x1]
        %v788 = vlaneseq
        %v789 = vshrl.u32 %v788, 7
        %v790 = vsub.s32 0, %v789
        %v791 = vrot.slane %v786, %v790
        %v809 = vunpack.c.l.b16 %v770
        %v810 = vunpack.c.l.b16 %v771
        %v811 = vunpack.c.l.b16 %v772
        %v812 = vunpack.c.l.b16 %v773
        %v813 = vunpack.c.l.b16 %v774
        %v814 = vunpack.c.l.b16 %v775
        %v815 = vunpack.c.l.b16 %v776
        %v816 = vunpack.c.l.b16 %v777
        %v817 = vunpack.c.l.b16 %v778
        %v818 = vunpack.c.l.b16 %v779
        %v819 = vunpack.c.l.b16 %v780
        %v820 = vunpack.c.l.b16 %v781
        %v821 = vunpack.c.l.b16 %v782
        %v822 = vunpack.c.l.b16 %v783
        %v823 = vunpack.c.l.b16 %v784
        %v824 = vunpack.c.l.b16 %v785
        %v825 = vpack.c.b16 %v810, %v809
        %v826 = vpack.c.b16 %v812, %v811
        %v827 = vpack.c.b16 %v814, %v813
        %v828 = vpack.c.b16 %v816, %v815
        %v829 = vpack.c.b16 %v818, %v817
        %v830 = vpack.c.b16 %v820, %v819
        %v831 = vpack.c.b16 %v822, %v821
        %v832 = vpack.c.b16 %v824, %v823
        %841 = vmatprep.subr.bf16.mxu0 0
        %842 = vmatpush1.bf16.msra.mxu0 %v832
        %843 = vmatprep.subr.bf16.mxu0 0
        %844 = vmatpush1.bf16.msra.mxu0 %v831
        %845 = vmatprep.subr.bf16.mxu0 0
        %846 = vmatpush1.bf16.msra.mxu0 %v830
        %847 = vmatprep.subr.bf16.mxu0 0
        %848 = vmatpush1.bf16.msra.mxu0 %v829
        %849 = vmatprep.subr.bf16.mxu0 0
        %850 = vmatpush1.bf16.msra.mxu0 %v828
        %851 = vmatprep.subr.bf16.mxu0 0
        %852 = vmatpush1.bf16.msra.mxu0 %v827
        %853 = vmatprep.subr.bf16.mxu0 0
        %854 = vmatpush1.bf16.msra.mxu0 %v826
        %855 = vmatprep.subr.bf16.mxu0 0
        %856 = vmatpush1.bf16.msra.mxu0 %v825
        %857 = vmatprep.subr.bf16.mxu0 0
        %858 = vmatpush2.bf16.msra.mxu0 0
        %859 = vmatprep.subr.bf16.mxu0 0
        %860 = vmatpush2.bf16.msra.mxu0 0
        %861 = vmatprep.subr.bf16.mxu0 0
        %862 = vmatpush2.bf16.msra.mxu0 0
        %863 = vmatprep.subr.bf16.mxu0 0
        %864 = vmatpush2.bf16.msra.mxu0 0
        %865 = vmatprep.subr.bf16.mxu0 0
        %866 = vmatpush2.bf16.msra.mxu0 0
        %867 = vmatprep.subr.bf16.mxu0 0
        %868 = vmatpush2.bf16.msra.mxu0 0
        %869 = vmatprep.subr.bf16.mxu0 0
        %870 = vmatpush2.bf16.msra.mxu0 0
        %871 = vmatprep.subr.bf16.mxu0 0
        %872 = vmatpush2.bf16.msra.mxu0 0
        %873 = vmatprep.mubr.bf16.mxu0 0
        %874 = vmatmul.mubr.bf16.gmra.mxu0 %v769
        %v875 = vpop.f32.mrf.mxu0
        %v876 = vadd.f32 %v791, %v875
        %v877 = vpop.f32.mrf.mxu0
        %v878 = vpop.f32.mrf.mxu0
        %v879 = vadd.f32 %v791, %v878
        %v880 = vpop.f32.mrf.mxu0
        %881 = vdwg.mxu0
        %v882 = vld [vmem:[#allocation8] sm:$0xf]
        %v883 = vld [vmem:[#allocation8 + $0x4] sm:$0xf]
        %v884 = vld [vmem:[#allocation8 + $0x8] sm:$0xf]
        %v885 = vld [vmem:[#allocation8 + $0xc] sm:$0xf]
        %v886 = vld [vmem:[#allocation8 + $0x10] sm:$0xf]
        %v887 = vld [vmem:[#allocation8 + $0x14] sm:$0xf]
        %v888 = vld [vmem:[#allocation8 + $0x18] sm:$0xf]
        %v889 = vld [vmem:[#allocation8 + $0x1c] sm:$0xf]
        %v890 = vld [vmem:[#allocation8 + $0x20] sm:$0xf]
        %v891 = vld [vmem:[#allocation8 + $0x24] sm:$0xf]
        %v892 = vld [vmem:[#allocation8 + $0x28] sm:$0xf]
        %v893 = vld [vmem:[#allocation8 + $0x2c] sm:$0xf]
        %v894 = vld [vmem:[#allocation8 + $0x30] sm:$0xf]
        %v895 = vld [vmem:[#allocation8 + $0x34] sm:$0xf]
        %v896 = vld [vmem:[#allocation8 + $0x38] sm:$0xf]
        %v897 = vld [vmem:[#allocation8 + $0x3c] sm:$0xf]
        %v898 = vld [vmem:[%s6] sm:$0x1]
        %v900 = vlaneseq
        %v901 = vshrl.u32 %v900, 7
        %v902 = vsub.s32 0, %v901
        %v903 = vrot.slane %v898, %v902
        %v921 = vunpack.c.l.b16 %v882
        %v922 = vunpack.c.l.b16 %v883
        %v923 = vunpack.c.l.b16 %v884
        %v924 = vunpack.c.l.b16 %v885
        %v925 = vunpack.c.l.b16 %v886
        %v926 = vunpack.c.l.b16 %v887
        %v927 = vunpack.c.l.b16 %v888
        %v928 = vunpack.c.l.b16 %v889
        %v929 = vunpack.c.l.b16 %v890
        %v930 = vunpack.c.l.b16 %v891
        %v931 = vunpack.c.l.b16 %v892
        %v932 = vunpack.c.l.b16 %v893
        %v933 = vunpack.c.l.b16 %v894
        %v934 = vunpack.c.l.b16 %v895
        %v935 = vunpack.c.l.b16 %v896
        %v936 = vunpack.c.l.b16 %v897
        %v937 = vpack.c.b16 %v922, %v921
        %v938 = vpack.c.b16 %v924, %v923
        %v939 = vpack.c.b16 %v926, %v925
        %v940 = vpack.c.b16 %v928, %v927
        %v941 = vpack.c.b16 %v930, %v929
        %v942 = vpack.c.b16 %v932, %v931
        %v943 = vpack.c.b16 %v934, %v933
        %v944 = vpack.c.b16 %v936, %v935
        %953 = vmatprep.subr.bf16.mxu0 0
        %954 = vmatpush1.bf16.msra.mxu0 %v944
        %955 = vmatprep.subr.bf16.mxu0 0
        %956 = vmatpush1.bf16.msra.mxu0 %v943
        %957 = vmatprep.subr.bf16.mxu0 0
        %958 = vmatpush1.bf16.msra.mxu0 %v942
        %959 = vmatprep.subr.bf16.mxu0 0
        %960 = vmatpush1.bf16.msra.mxu0 %v941
        %961 = vmatprep.subr.bf16.mxu0 0
        %962 = vmatpush1.bf16.msra.mxu0 %v940
        %963 = vmatprep.subr.bf16.mxu0 0
        %964 = vmatpush1.bf16.msra.mxu0 %v939
        %965 = vmatprep.subr.bf16.mxu0 0
        %966 = vmatpush1.bf16.msra.mxu0 %v938
        %967 = vmatprep.subr.bf16.mxu0 0
        %968 = vmatpush1.bf16.msra.mxu0 %v937
        %969 = vmatprep.subr.bf16.mxu0 0
        %970 = vmatpush2.bf16.msra.mxu0 0
        %971 = vmatprep.subr.bf16.mxu0 0
        %972 = vmatpush2.bf16.msra.mxu0 0
        %973 = vmatprep.subr.bf16.mxu0 0
        %974 = vmatpush2.bf16.msra.mxu0 0
        %975 = vmatprep.subr.bf16.mxu0 0
        %976 = vmatpush2.bf16.msra.mxu0 0
        %977 = vmatprep.subr.bf16.mxu0 0
        %978 = vmatpush2.bf16.msra.mxu0 0
        %979 = vmatprep.subr.bf16.mxu0 0
        %980 = vmatpush2.bf16.msra.mxu0 0
        %981 = vmatprep.subr.bf16.mxu0 0
        %982 = vmatpush2.bf16.msra.mxu0 0
        %983 = vmatprep.subr.bf16.mxu0 0
        %984 = vmatpush2.bf16.msra.mxu0 0
        %985 = vmatprep.mubr.bf16.mxu0 0
        %986 = vmatmul.mubr.bf16.gmra.mxu0 %v769
        %v987 = vpop.f32.mrf.mxu0
        %v988 = vadd.f32 %v903, %v987
        %v989 = vpop.f32.mrf.mxu0
        %v990 = vpop.f32.mrf.mxu0
        %v991 = vadd.f32 %v903, %v990
        %v992 = vpop.f32.mrf.mxu0
        %993 = vdwg.mxu0
        %v994 = vld [vmem:[#allocation10] sm:$0xf]
        %v995 = vld [vmem:[#allocation10 + $0x4] sm:$0xf]
        %v996 = vld [vmem:[#allocation10 + $0x8] sm:$0xf]
        %v997 = vld [vmem:[#allocation10 + $0xc] sm:$0xf]
        %v998 = vld [vmem:[#allocation10 + $0x10] sm:$0xf]
        %v999 = vld [vmem:[#allocation10 + $0x14] sm:$0xf]
        %v1000 = vld [vmem:[#allocation10 + $0x18] sm:$0xf]
        %v1001 = vld [vmem:[#allocation10 + $0x1c] sm:$0xf]
        %v1002 = vld [vmem:[#allocation10 + $0x20] sm:$0xf]
        %v1003 = vld [vmem:[#allocation10 + $0x24] sm:$0xf]
        %v1004 = vld [vmem:[#allocation10 + $0x28] sm:$0xf]
        %v1005 = vld [vmem:[#allocation10 + $0x2c] sm:$0xf]
        %v1006 = vld [vmem:[#allocation10 + $0x30] sm:$0xf]
        %v1007 = vld [vmem:[#allocation10 + $0x34] sm:$0xf]
        %v1008 = vld [vmem:[#allocation10 + $0x38] sm:$0xf]
        %v1009 = vld [vmem:[#allocation10 + $0x3c] sm:$0xf]
        %v1010 = vld [vmem:[%s8] sm:$0x1]
        %v1012 = vlaneseq
        %v1013 = vshrl.u32 %v1012, 7
        %v1014 = vsub.s32 0, %v1013
        %v1015 = vrot.slane %v1010, %v1014
        %v1033 = vunpack.c.l.b16 %v994
        %v1034 = vunpack.c.l.b16 %v995
        %v1035 = vunpack.c.l.b16 %v996
        %v1036 = vunpack.c.l.b16 %v997
        %v1037 = vunpack.c.l.b16 %v998
        %v1038 = vunpack.c.l.b16 %v999
        %v1039 = vunpack.c.l.b16 %v1000
        %v1040 = vunpack.c.l.b16 %v1001
        %v1041 = vunpack.c.l.b16 %v1002
        %v1042 = vunpack.c.l.b16 %v1003
        %v1043 = vunpack.c.l.b16 %v1004
        %v1044 = vunpack.c.l.b16 %v1005
        %v1045 = vunpack.c.l.b16 %v1006
        %v1046 = vunpack.c.l.b16 %v1007
        %v1047 = vunpack.c.l.b16 %v1008
        %v1048 = vunpack.c.l.b16 %v1009
        %v1049 = vpack.c.b16 %v1034, %v1033
        %v1050 = vpack.c.b16 %v1036, %v1035
        %v1051 = vpack.c.b16 %v1038, %v1037
        %v1052 = vpack.c.b16 %v1040, %v1039
        %v1053 = vpack.c.b16 %v1042, %v1041
        %v1054 = vpack.c.b16 %v1044, %v1043
        %v1055 = vpack.c.b16 %v1046, %v1045
        %v1056 = vpack.c.b16 %v1048, %v1047
        %1065 = vmatprep.subr.bf16.mxu0 0
        %1066 = vmatpush1.bf16.msra.mxu0 %v1056
        %1067 = vmatprep.subr.bf16.mxu0 0
        %1068 = vmatpush1.bf16.msra.mxu0 %v1055
        %1069 = vmatprep.subr.bf16.mxu0 0
        %1070 = vmatpush1.bf16.msra.mxu0 %v1054
        %1071 = vmatprep.subr.bf16.mxu0 0
        %1072 = vmatpush1.bf16.msra.mxu0 %v1053
        %1073 = vmatprep.subr.bf16.mxu0 0
        %1074 = vmatpush1.bf16.msra.mxu0 %v1052
        %1075 = vmatprep.subr.bf16.mxu0 0
        %1076 = vmatpush1.bf16.msra.mxu0 %v1051
        %1077 = vmatprep.subr.bf16.mxu0 0
        %1078 = vmatpush1.bf16.msra.mxu0 %v1050
        %1079 = vmatprep.subr.bf16.mxu0 0
        %1080 = vmatpush1.bf16.msra.mxu0 %v1049
        %1081 = vmatprep.subr.bf16.mxu0 0
        %1082 = vmatpush2.bf16.msra.mxu0 0
        %1083 = vmatprep.subr.bf16.mxu0 0
        %1084 = vmatpush2.bf16.msra.mxu0 0
        %1085 = vmatprep.subr.bf16.mxu0 0
        %1086 = vmatpush2.bf16.msra.mxu0 0
        %1087 = vmatprep.subr.bf16.mxu0 0
        %1088 = vmatpush2.bf16.msra.mxu0 0
        %1089 = vmatprep.subr.bf16.mxu0 0
        %1090 = vmatpush2.bf16.msra.mxu0 0
        %1091 = vmatprep.subr.bf16.mxu0 0
        %1092 = vmatpush2.bf16.msra.mxu0 0
        %1093 = vmatprep.subr.bf16.mxu0 0
        %1094 = vmatpush2.bf16.msra.mxu0 0
        %1095 = vmatprep.subr.bf16.mxu0 0
        %1096 = vmatpush2.bf16.msra.mxu0 0
        %1097 = vmatprep.mubr.bf16.mxu0 0
        %1098 = vmatmul.mubr.bf16.gmra.mxu0 %v769
        %v1099 = vpop.f32.mrf.mxu0
        %v1100 = vadd.f32 %v1015, %v1099
        %v1101 = vpop.f32.mrf.mxu0
        %v1102 = vpop.f32.mrf.mxu0
        %v1103 = vadd.f32 %v1015, %v1102
        %v1104 = vpop.f32.mrf.mxu0
        %1105 = vdwg.mxu0
        %v1106 = vmul.f32 %v876, 0.125
        %v1107 = vmul.f32 %v879, 0.125
        %1110 = vrot.lane.b32.xlu0 %v1106, 64
        %v1111 = vpop.permute.xlu0 %1110
        %1112 = vrot.lane.b32.xlu0 %v1107, 64
        %v1113 = vpop.permute.xlu0 %1112
        %v1116 = vpack.c.bf16 %v1106, %v1106
        %v1117 = vpack.c.bf16 %v1107, %v1107
        %v1118 = vpack.c.bf16 %v1111, %v1111
        %v1119 = vpack.c.bf16 %v1113, %v1113
        %1122 = vrot.lane.b32.xlu0 %v988, 64
        %v1123 = vpop.permute.xlu0 %1122
        %1124 = vrot.lane.b32.xlu0 %v991, 64
        %v1125 = vpop.permute.xlu0 %1124
        %v1128 = vpack.c.bf16 %v988, %v988
        %v1129 = vpack.c.bf16 %v991, %v991
        %v1130 = vpack.c.bf16 %v1123, %v1123
        %v1131 = vpack.c.bf16 %v1125, %v1125
        %1134 = vrot.lane.b32.xlu0 %v1100, 64
        %v1135 = vpop.permute.xlu0 %1134
        %1136 = vrot.lane.b32.xlu0 %v1103, 64
        %v1137 = vpop.permute.xlu0 %1136
        %v1140 = vpack.c.bf16 %v1100, %v1100
        %v1141 = vpack.c.bf16 %v1103, %v1103
        %v1142 = vpack.c.bf16 %v1135, %v1135
        %v1143 = vpack.c.bf16 %v1137, %v1137
        %vm1144 = vcmask 523264
        %v1146 = vsel %vm1144, %v1116, 0
        %v1149 = vsel %vm1144, %v1128, 0
        %1151 = vmatprep.subr.bf16.mxu0 0
        %1152 = vmatpush1.bf16.xpose.msra.mxu0 0
        %1153 = vmatprep.subr.bf16.mxu0 0
        %1154 = vmatpush1.bf16.xpose.msra.mxu0 0
        %1155 = vmatprep.subr.bf16.mxu0 0
        %1156 = vmatpush1.bf16.xpose.msra.mxu0 0
        %1157 = vmatprep.subr.bf16.mxu0 0
        %1158 = vmatpush1.bf16.xpose.msra.mxu0 0
        %1159 = vmatprep.subr.bf16.mxu0 0
        %1160 = vmatpush1.bf16.xpose.msra.mxu0 0
        %1161 = vmatprep.subr.bf16.mxu0 0
        %1162 = vmatpush1.bf16.xpose.msra.mxu0 0
        %1163 = vmatprep.subr.bf16.mxu0 0
        %1164 = vmatpush1.bf16.xpose.msra.mxu0 0
        %1165 = vmatprep.subr.bf16.mxu0 0
        %1166 = vmatpush1.bf16.xpose.msra.mxu0 %v1149
        %1167 = vmatprep.subr.bf16.mxu0 0
        %1168 = vmatpush2.bf16.xpose.msra.mxu0 0
        %1169 = vmatprep.subr.bf16.mxu0 0
        %1170 = vmatpush2.bf16.xpose.msra.mxu0 0
        %1171 = vmatprep.subr.bf16.mxu0 0
        %1172 = vmatpush2.bf16.xpose.msra.mxu0 0
        %1173 = vmatprep.subr.bf16.mxu0 0
        %1174 = vmatpush2.bf16.xpose.msra.mxu0 0
        %1175 = vmatprep.subr.bf16.mxu0 0
        %1176 = vmatpush2.bf16.xpose.msra.mxu0 0
        %1177 = vmatprep.subr.bf16.mxu0 0
        %1178 = vmatpush2.bf16.xpose.msra.mxu0 0
        %1179 = vmatprep.subr.bf16.mxu0 0
        %1180 = vmatpush2.bf16.xpose.msra.mxu0 0
        %1181 = vmatprep.subr.bf16.mxu0 0
        %1182 = vmatpush2.bf16.xpose.msra.mxu0 0
        %1183 = vmatprep.mubr.bf16.mxu0 0
        %1184 = vmatmul.mubr.bf16.gmra.mxu0 %v1146
        %v1185 = vpop.f32.mrf.mxu0
        %v1186 = vadd.f32 0.0, %v1185
        %v1187 = vpop.f32.mrf.mxu0
        %v1188 = vpop.f32.mrf.mxu0
        %v1189 = vpop.f32.mrf.mxu0
        %1190 = vdwg.mxu0
        %v1192 = vsel %vm1144, %v1117, 0
        %v1195 = vsel %vm1144, %v1129, 0
        %1197 = vmatprep.subr.bf16.mxu0 0
        %1198 = vmatpush1.bf16.xpose.msra.mxu0 0
        %1199 = vmatprep.subr.bf16.mxu0 0
        %1200 = vmatpush1.bf16.xpose.msra.mxu0 0
        %1201 = vmatprep.subr.bf16.mxu0 0
        %1202 = vmatpush1.bf16.xpose.msra.mxu0 0
        %1203 = vmatprep.subr.bf16.mxu0 0
        %1204 = vmatpush1.bf16.xpose.msra.mxu0 0
        %1205 = vmatprep.subr.bf16.mxu0 0
        %1206 = vmatpush1.bf16.xpose.msra.mxu0 0
        %1207 = vmatprep.subr.bf16.mxu0 0
        %1208 = vmatpush1.bf16.xpose.msra.mxu0 0
        %1209 = vmatprep.subr.bf16.mxu0 0
        %1210 = vmatpush1.bf16.xpose.msra.mxu0 0
        %1211 = vmatprep.subr.bf16.mxu0 0
        %1212 = vmatpush1.bf16.xpose.msra.mxu0 %v1195
        %1213 = vmatprep.subr.bf16.mxu0 0
        %1214 = vmatpush2.bf16.xpose.msra.mxu0 0
        %1215 = vmatprep.subr.bf16.mxu0 0
        %1216 = vmatpush2.bf16.xpose.msra.mxu0 0
        %1217 = vmatprep.subr.bf16.mxu0 0
        %1218 = vmatpush2.bf16.xpose.msra.mxu0 0
        %1219 = vmatprep.subr.bf16.mxu0 0
        %1220 = vmatpush2.bf16.xpose.msra.mxu0 0
        %1221 = vmatprep.subr.bf16.mxu0 0
        %1222 = vmatpush2.bf16.xpose.msra.mxu0 0
        %1223 = vmatprep.subr.bf16.mxu0 0
        %1224 = vmatpush2.bf16.xpose.msra.mxu0 0
        %1225 = vmatprep.subr.bf16.mxu0 0
        %1226 = vmatpush2.bf16.xpose.msra.mxu0 0
        %1227 = vmatprep.subr.bf16.mxu0 0
        %1228 = vmatpush2.bf16.xpose.msra.mxu0 0
        %1229 = vmatprep.mubr.bf16.mxu0 0
        %1230 = vmatmul.mubr.bf16.gmra.mxu0 %v1192
        %v1231 = vpop.f32.mrf.mxu0
        %v1232 = vadd.f32 0.0, %v1231
        %v1233 = vpop.f32.mrf.mxu0
        %v1234 = vpop.f32.mrf.mxu0
        %v1235 = vpop.f32.mrf.mxu0
        %1236 = vdwg.mxu0
        %v1238 = vsel %vm1144, %v1118, 0
        %v1241 = vsel %vm1144, %v1130, 0
        %1243 = vmatprep.subr.bf16.mxu0 0
        %1244 = vmatpush1.bf16.xpose.msra.mxu0 0
        %1245 = vmatprep.subr.bf16.mxu0 0
        %1246 = vmatpush1.bf16.xpose.msra.mxu0 0
        %1247 = vmatprep.subr.bf16.mxu0 0
        %1248 = vmatpush1.bf16.xpose.msra.mxu0 0
        %1249 = vmatprep.subr.bf16.mxu0 0
        %1250 = vmatpush1.bf16.xpose.msra.mxu0 0
        %1251 = vmatprep.subr.bf16.mxu0 0
        %1252 = vmatpush1.bf16.xpose.msra.mxu0 0
        %1253 = vmatprep.subr.bf16.mxu0 0
        %1254 = vmatpush1.bf16.xpose.msra.mxu0 0
        %1255 = vmatprep.subr.bf16.mxu0 0
        %1256 = vmatpush1.bf16.xpose.msra.mxu0 0
        %1257 = vmatprep.subr.bf16.mxu0 0
        %1258 = vmatpush1.bf16.xpose.msra.mxu0 %v1241
        %1259 = vmatprep.subr.bf16.mxu0 0
        %1260 = vmatpush2.bf16.xpose.msra.mxu0 0
        %1261 = vmatprep.subr.bf16.mxu0 0
        %1262 = vmatpush2.bf16.xpose.msra.mxu0 0
        %1263 = vmatprep.subr.bf16.mxu0 0
        %1264 = vmatpush2.bf16.xpose.msra.mxu0 0
        %1265 = vmatprep.subr.bf16.mxu0 0
        %1266 = vmatpush2.bf16.xpose.msra.mxu0 0
        %1267 = vmatprep.subr.bf16.mxu0 0
        %1268 = vmatpush2.bf16.xpose.msra.mxu0 0
        %1269 = vmatprep.subr.bf16.mxu0 0
        %1270 = vmatpush2.bf16.xpose.msra.mxu0 0
        %1271 = vmatprep.subr.bf16.mxu0 0
        %1272 = vmatpush2.bf16.xpose.msra.mxu0 0
        %1273 = vmatprep.subr.bf16.mxu0 0
        %1274 = vmatpush2.bf16.xpose.msra.mxu0 0
        %1275 = vmatprep.mubr.bf16.mxu0 0
        %1276 = vmatmul.mubr.bf16.gmra.mxu0 %v1238
        %v1277 = vpop.f32.mrf.mxu0
        %v1278 = vadd.f32 0.0, %v1277
        %v1279 = vpop.f32.mrf.mxu0
        %v1280 = vpop.f32.mrf.mxu0
        %v1281 = vpop.f32.mrf.mxu0
        %1282 = vdwg.mxu0
        %v1284 = vsel %vm1144, %v1119, 0
        %v1287 = vsel %vm1144, %v1131, 0
        %1289 = vmatprep.subr.bf16.mxu0 0
        %1290 = vmatpush1.bf16.xpose.msra.mxu0 0
        %1291 = vmatprep.subr.bf16.mxu0 0
        %1292 = vmatpush1.bf16.xpose.msra.mxu0 0
        %1293 = vmatprep.subr.bf16.mxu0 0
        %1294 = vmatpush1.bf16.xpose.msra.mxu0 0
        %1295 = vmatprep.subr.bf16.mxu0 0
        %1296 = vmatpush1.bf16.xpose.msra.mxu0 0
        %1297 = vmatprep.subr.bf16.mxu0 0
        %1298 = vmatpush1.bf16.xpose.msra.mxu0 0
        %1299 = vmatprep.subr.bf16.mxu0 0
        %1300 = vmatpush1.bf16.xpose.msra.mxu0 0
        %1301 = vmatprep.subr.bf16.mxu0 0
        %1302 = vmatpush1.bf16.xpose.msra.mxu0 0
        %1303 = vmatprep.subr.bf16.mxu0 0
        %1304 = vmatpush1.bf16.xpose.msra.mxu0 %v1287
        %1305 = vmatprep.subr.bf16.mxu0 0
        %1306 = vmatpush2.bf16.xpose.msra.mxu0 0
        %1307 = vmatprep.subr.bf16.mxu0 0
        %1308 = vmatpush2.bf16.xpose.msra.mxu0 0
        %1309 = vmatprep.subr.bf16.mxu0 0
        %1310 = vmatpush2.bf16.xpose.msra.mxu0 0
        %1311 = vmatprep.subr.bf16.mxu0 0
        %1312 = vmatpush2.bf16.xpose.msra.mxu0 0
        %1313 = vmatprep.subr.bf16.mxu0 0
        %1314 = vmatpush2.bf16.xpose.msra.mxu0 0
        %1315 = vmatprep.subr.bf16.mxu0 0
        %1316 = vmatpush2.bf16.xpose.msra.mxu0 0
        %1317 = vmatprep.subr.bf16.mxu0 0
        %1318 = vmatpush2.bf16.xpose.msra.mxu0 0
        %1319 = vmatprep.subr.bf16.mxu0 0
        %1320 = vmatpush2.bf16.xpose.msra.mxu0 0
        %1321 = vmatprep.mubr.bf16.mxu0 0
        %1322 = vmatmul.mubr.bf16.gmra.mxu0 %v1284
        %v1323 = vpop.f32.mrf.mxu0
        %v1324 = vadd.f32 0.0, %v1323
        %v1325 = vpop.f32.mrf.mxu0
        %v1326 = vpop.f32.mrf.mxu0
        %v1327 = vpop.f32.mrf.mxu0
        %1328 = vdwg.mxu0
        %vm1329 = vcmask 64512
        %v1330 = vsel %vm1329, %v1186, -inf
        %1331 = vmax.xlane.f32.xlu0 %v1330
        %v1332 = vpop.xlane.xlu0 %1331
        %v1333 = vsel %vm1329, %v1232, -inf
        %1334 = vmax.xlane.f32.xlu0 %v1333
        %v1335 = vpop.xlane.xlu0 %1334
        %v1336 = vsel %vm1329, %v1278, -inf
        %1337 = vmax.xlane.f32.xlu0 %v1336
        %v1338 = vpop.xlane.xlu0 %1337
        %v1339 = vsel %vm1329, %v1324, -inf
        %1340 = vmax.xlane.f32.xlu0 %v1339
        %v1341 = vpop.xlane.xlu0 %1340
        %v1342 = vsub.f32 %v1186, %v1332
        %v1343 = vsub.f32 %v1232, %v1335
        %v1344 = vsub.f32 %v1278, %v1338
        %v1345 = vsub.f32 %v1324, %v1341
        %v1346 = vmul.f32 %v1342, 1.442695
        %v1347 = vpow.pop %v1346
        %v1348 = vmul.f32 %v1343, 1.442695
        %v1349 = vpow.pop %v1348
        %v1350 = vmul.f32 %v1344, 1.442695
        %v1351 = vpow.pop %v1350
        %v1352 = vmul.f32 %v1345, 1.442695
        %v1353 = vpow.pop %v1352
        %v1354 = vsel %vm1329, %v1347, 0.0
        %1355 = vadd.xlane.f32.xlu0 %v1354
        %v1356 = vpop.xlane.xlu0 %1355
        %v1357 = vsel %vm1329, %v1349, 0.0
        %1358 = vadd.xlane.f32.xlu0 %v1357
        %v1359 = vpop.xlane.xlu0 %1358
        %v1360 = vsel %vm1329, %v1351, 0.0
        %1361 = vadd.xlane.f32.xlu0 %v1360
        %v1362 = vpop.xlane.xlu0 %1361
        %v1363 = vsel %vm1329, %v1353, 0.0
        %1364 = vadd.xlane.f32.xlu0 %v1363
        %v1365 = vpop.xlane.xlu0 %1364
        %v1366 = vrcp.pop %v1356
        %v1367 = vrcp.pop %v1359
        %v1368 = vrcp.pop %v1362
        %v1369 = vrcp.pop %v1365
        %v1370 = vmul.f32 %v1347, %v1366
        %v1371 = vmul.f32 %v1349, %v1367
        %v1372 = vmul.f32 %v1351, %v1368
        %v1373 = vmul.f32 %v1353, %v1369
        %v1374 = vpack.c.bf16 %v1370, %v1370
        %v1375 = vpack.c.bf16 %v1371, %v1371
        %v1376 = vpack.c.bf16 %v1372, %v1372
        %v1377 = vpack.c.bf16 %v1373, %v1373
        %v1379 = vsel %vm1329, %v1374, 0
        %vm1381 = vcmask 1043456
        %v1383 = vsel %vm1381, %v1140, 0
        %1385 = vmatprep.subr.bf16.mxu0 0
        %1386 = vmatpush1.bf16.msra.mxu0 0
        %1387 = vmatprep.subr.bf16.mxu0 0
        %1388 = vmatpush1.bf16.msra.mxu0 0
        %1389 = vmatprep.subr.bf16.mxu0 0
        %1390 = vmatpush1.bf16.msra.mxu0 0
        %1391 = vmatprep.subr.bf16.mxu0 0
        %1392 = vmatpush1.bf16.msra.mxu0 0
        %1393 = vmatprep.subr.bf16.mxu0 0
        %1394 = vmatpush1.bf16.msra.mxu0 0
        %1395 = vmatprep.subr.bf16.mxu0 0
        %1396 = vmatpush1.bf16.msra.mxu0 0
        %1397 = vmatprep.subr.bf16.mxu0 0
        %1398 = vmatpush1.bf16.msra.mxu0 0
        %1399 = vmatprep.subr.bf16.mxu0 0
        %1400 = vmatpush1.bf16.msra.mxu0 %v1383
        %1401 = vmatprep.subr.bf16.mxu0 0
        %1402 = vmatpush2.bf16.msra.mxu0 0
        %1403 = vmatprep.subr.bf16.mxu0 0
        %1404 = vmatpush2.bf16.msra.mxu0 0
        %1405 = vmatprep.subr.bf16.mxu0 0
        %1406 = vmatpush2.bf16.msra.mxu0 0
        %1407 = vmatprep.subr.bf16.mxu0 0
        %1408 = vmatpush2.bf16.msra.mxu0 0
        %1409 = vmatprep.subr.bf16.mxu0 0
        %1410 = vmatpush2.bf16.msra.mxu0 0
        %1411 = vmatprep.subr.bf16.mxu0 0
        %1412 = vmatpush2.bf16.msra.mxu0 0
        %1413 = vmatprep.subr.bf16.mxu0 0
        %1414 = vmatpush2.bf16.msra.mxu0 0
        %1415 = vmatprep.subr.bf16.mxu0 0
        %1416 = vmatpush2.bf16.msra.mxu0 0
        %1417 = vmatprep.mubr.bf16.mxu0 0
        %1418 = vmatmul.mubr.bf16.gmra.mxu0 %v1379
        %v1419 = vpop.f32.mrf.mxu0
        %v1420 = vadd.f32 0.0, %v1419
        %v1421 = vpop.f32.mrf.mxu0
        %v1422 = vpop.f32.mrf.mxu0
        %v1423 = vpop.f32.mrf.mxu0
        %1424 = vdwg.mxu0
        %v1426 = vsel %vm1329, %v1375, 0
        %v1429 = vsel %vm1381, %v1141, 0
        %1431 = vmatprep.subr.bf16.mxu0 0
        %1432 = vmatpush1.bf16.msra.mxu0 0
        %1433 = vmatprep.subr.bf16.mxu0 0
        %1434 = vmatpush1.bf16.msra.mxu0 0
        %1435 = vmatprep.subr.bf16.mxu0 0
        %1436 = vmatpush1.bf16.msra.mxu0 0
        %1437 = vmatprep.subr.bf16.mxu0 0
        %1438 = vmatpush1.bf16.msra.mxu0 0
        %1439 = vmatprep.subr.bf16.mxu0 0
        %1440 = vmatpush1.bf16.msra.mxu0 0
        %1441 = vmatprep.subr.bf16.mxu0 0
        %1442 = vmatpush1.bf16.msra.mxu0 0
        %1443 = vmatprep.subr.bf16.mxu0 0
        %1444 = vmatpush1.bf16.msra.mxu0 0
        %1445 = vmatprep.subr.bf16.mxu0 0
        %1446 = vmatpush1.bf16.msra.mxu0 %v1429
        %1447 = vmatprep.subr.bf16.mxu0 0
        %1448 = vmatpush2.bf16.msra.mxu0 0
        %1449 = vmatprep.subr.bf16.mxu0 0
        %1450 = vmatpush2.bf16.msra.mxu0 0
        %1451 = vmatprep.subr.bf16.mxu0 0
        %1452 = vmatpush2.bf16.msra.mxu0 0
        %1453 = vmatprep.subr.bf16.mxu0 0
        %1454 = vmatpush2.bf16.msra.mxu0 0
        %1455 = vmatprep.subr.bf16.mxu0 0
        %1456 = vmatpush2.bf16.msra.mxu0 0
        %1457 = vmatprep.subr.bf16.mxu0 0
        %1458 = vmatpush2.bf16.msra.mxu0 0
        %1459 = vmatprep.subr.bf16.mxu0 0
        %1460 = vmatpush2.bf16.msra.mxu0 0
        %1461 = vmatprep.subr.bf16.mxu0 0
        %1462 = vmatpush2.bf16.msra.mxu0 0
        %1463 = vmatprep.mubr.bf16.mxu0 0
        %1464 = vmatmul.mubr.bf16.gmra.mxu0 %v1426
        %v1465 = vpop.f32.mrf.mxu0
        %v1466 = vadd.f32 0.0, %v1465
        %v1467 = vpop.f32.mrf.mxu0
        %v1468 = vpop.f32.mrf.mxu0
        %v1469 = vpop.f32.mrf.mxu0
        %1470 = vdwg.mxu0
        %v1472 = vsel %vm1329, %v1376, 0
        %v1475 = vsel %vm1381, %v1142, 0
        %1477 = vmatprep.subr.bf16.mxu0 0
        %1478 = vmatpush1.bf16.msra.mxu0 0
        %1479 = vmatprep.subr.bf16.mxu0 0
        %1480 = vmatpush1.bf16.msra.mxu0 0
        %1481 = vmatprep.subr.bf16.mxu0 0
        %1482 = vmatpush1.bf16.msra.mxu0 0
        %1483 = vmatprep.subr.bf16.mxu0 0
        %1484 = vmatpush1.bf16.msra.mxu0 0
        %1485 = vmatprep.subr.bf16.mxu0 0
        %1486 = vmatpush1.bf16.msra.mxu0 0
        %1487 = vmatprep.subr.bf16.mxu0 0
        %1488 = vmatpush1.bf16.msra.mxu0 0
        %1489 = vmatprep.subr.bf16.mxu0 0
        %1490 = vmatpush1.bf16.msra.mxu0 0
        %1491 = vmatprep.subr.bf16.mxu0 0
        %1492 = vmatpush1.bf16.msra.mxu0 %v1475
        %1493 = vmatprep.subr.bf16.mxu0 0
        %1494 = vmatpush2.bf16.msra.mxu0 0
        %1495 = vmatprep.subr.bf16.mxu0 0
        %1496 = vmatpush2.bf16.msra.mxu0 0
        %1497 = vmatprep.subr.bf16.mxu0 0
        %1498 = vmatpush2.bf16.msra.mxu0 0
        %1499 = vmatprep.subr.bf16.mxu0 0
        %1500 = vmatpush2.bf16.msra.mxu0 0
        %1501 = vmatprep.subr.bf16.mxu0 0
        %1502 = vmatpush2.bf16.msra.mxu0 0
        %1503 = vmatprep.subr.bf16.mxu0 0
        %1504 = vmatpush2.bf16.msra.mxu0 0
        %1505 = vmatprep.subr.bf16.mxu0 0
        %1506 = vmatpush2.bf16.msra.mxu0 0
        %1507 = vmatprep.subr.bf16.mxu0 0
        %1508 = vmatpush2.bf16.msra.mxu0 0
        %1509 = vmatprep.mubr.bf16.mxu0 0
        %1510 = vmatmul.mubr.bf16.gmra.mxu0 %v1472
        %v1511 = vpop.f32.mrf.mxu0
        %v1512 = vadd.f32 0.0, %v1511
        %v1513 = vpop.f32.mrf.mxu0
        %v1514 = vpop.f32.mrf.mxu0
        %v1515 = vpop.f32.mrf.mxu0
        %1516 = vdwg.mxu0
        %v1518 = vsel %vm1329, %v1377, 0
        %v1521 = vsel %vm1381, %v1143, 0
        %1523 = vmatprep.subr.bf16.mxu0 0
        %1524 = vmatpush1.bf16.msra.mxu0 0
        %1525 = vmatprep.subr.bf16.mxu0 0
        %1526 = vmatpush1.bf16.msra.mxu0 0
        %1527 = vmatprep.subr.bf16.mxu0 0
        %1528 = vmatpush1.bf16.msra.mxu0 0
        %1529 = vmatprep.subr.bf16.mxu0 0
        %1530 = vmatpush1.bf16.msra.mxu0 0
        %1531 = vmatprep.subr.bf16.mxu0 0
        %1532 = vmatpush1.bf16.msra.mxu0 0
        %1533 = vmatprep.subr.bf16.mxu0 0
        %1534 = vmatpush1.bf16.msra.mxu0 0
        %1535 = vmatprep.subr.bf16.mxu0 0
        %1536 = vmatpush1.bf16.msra.mxu0 0
        %1537 = vmatprep.subr.bf16.mxu0 0
        %1538 = vmatpush1.bf16.msra.mxu0 %v1521
        %1539 = vmatprep.subr.bf16.mxu0 0
        %1540 = vmatpush2.bf16.msra.mxu0 0
        %1541 = vmatprep.subr.bf16.mxu0 0
        %1542 = vmatpush2.bf16.msra.mxu0 0
        %1543 = vmatprep.subr.bf16.mxu0 0
        %1544 = vmatpush2.bf16.msra.mxu0 0
        %1545 = vmatprep.subr.bf16.mxu0 0
        %1546 = vmatpush2.bf16.msra.mxu0 0
        %1547 = vmatprep.subr.bf16.mxu0 0
        %1548 = vmatpush2.bf16.msra.mxu0 0
        %1549 = vmatprep.subr.bf16.mxu0 0
        %1550 = vmatpush2.bf16.msra.mxu0 0
        %1551 = vmatprep.subr.bf16.mxu0 0
        %1552 = vmatpush2.bf16.msra.mxu0 0
        %1553 = vmatprep.subr.bf16.mxu0 0
        %1554 = vmatpush2.bf16.msra.mxu0 0
        %1555 = vmatprep.mubr.bf16.mxu0 0
        %1556 = vmatmul.mubr.bf16.gmra.mxu0 %v1518
        %v1557 = vpop.f32.mrf.mxu0
        %v1558 = vadd.f32 0.0, %v1557
        %v1559 = vpop.f32.mrf.mxu0
        %v1560 = vpop.f32.mrf.mxu0
        %v1561 = vpop.f32.mrf.mxu0
        %1562 = vdwg.mxu0
        %1565 = vrot.lane.b32.xlu0 %v1512, 64
        %v1566 = vpop.permute.xlu0 %1565
        %1567 = vrot.lane.b32.xlu0 %v1558, 64
        %v1568 = vpop.permute.xlu0 %1567
        %v1571 = vsel %vm1144, %v1420, %v1566
        %v1572 = vsel %vm1144, %v1466, %v1568
        %v1573 = vpack.c.bf16 %v1572, %v1571
        %v1574 = vld [vmem:[#allocation11] sm:$0xf]
        %v1575 = vld [vmem:[#allocation11 + $0x4] sm:$0xf]
        %v1576 = vld [vmem:[#allocation11 + $0x8] sm:$0xf]
        %v1577 = vld [vmem:[#allocation11 + $0xc] sm:$0xf]
        %v1578 = vld [vmem:[#allocation11 + $0x10] sm:$0xf]
        %v1579 = vld [vmem:[#allocation11 + $0x14] sm:$0xf]
        %v1580 = vld [vmem:[#allocation11 + $0x18] sm:$0xf]
        %v1581 = vld [vmem:[#allocation11 + $0x1c] sm:$0xf]
        %v1582 = vld [vmem:[#allocation11 + $0x20] sm:$0xf]
        %v1583 = vld [vmem:[#allocation11 + $0x24] sm:$0xf]
        %v1584 = vld [vmem:[#allocation11 + $0x28] sm:$0xf]
        %v1585 = vld [vmem:[#allocation11 + $0x2c] sm:$0xf]
        %v1586 = vld [vmem:[#allocation11 + $0x30] sm:$0xf]
        %v1587 = vld [vmem:[#allocation11 + $0x34] sm:$0xf]
        %v1588 = vld [vmem:[#allocation11 + $0x38] sm:$0xf]
        %v1589 = vld [vmem:[#allocation11 + $0x3c] sm:$0xf]
        %v1590 = vld [vmem:[%s10] sm:$0x1]
        %v1592 = vlaneseq
        %v1593 = vshrl.u32 %v1592, 7
        %v1594 = vsub.s32 0, %v1593
        %v1595 = vrot.slane %v1590, %v1594
        %v1613 = vunpack.c.l.b16 %v1574
        %v1614 = vunpack.c.l.b16 %v1575
        %v1615 = vunpack.c.l.b16 %v1576
        %v1616 = vunpack.c.l.b16 %v1577
        %v1617 = vunpack.c.l.b16 %v1578
        %v1618 = vunpack.c.l.b16 %v1579
        %v1619 = vunpack.c.l.b16 %v1580
        %v1620 = vunpack.c.l.b16 %v1581
        %v1621 = vunpack.c.l.b16 %v1582
        %v1622 = vunpack.c.l.b16 %v1583
        %v1623 = vunpack.c.l.b16 %v1584
        %v1624 = vunpack.c.l.b16 %v1585
        %v1625 = vunpack.c.l.b16 %v1586
        %v1626 = vunpack.c.l.b16 %v1587
        %v1627 = vunpack.c.l.b16 %v1588
        %v1628 = vunpack.c.l.b16 %v1589
        %v1629 = vpack.c.b16 %v1614, %v1613
        %v1630 = vpack.c.b16 %v1616, %v1615
        %v1631 = vpack.c.b16 %v1618, %v1617
        %v1632 = vpack.c.b16 %v1620, %v1619
        %v1633 = vpack.c.b16 %v1622, %v1621
        %v1634 = vpack.c.b16 %v1624, %v1623
        %v1635 = vpack.c.b16 %v1626, %v1625
        %v1636 = vpack.c.b16 %v1628, %v1627
        %1645 = vmatprep.subr.bf16.mxu0 0
        %1646 = vmatpush1.bf16.msra.mxu0 %v1636
        %1647 = vmatprep.subr.bf16.mxu0 0
        %1648 = vmatpush1.bf16.msra.mxu0 %v1635
        %1649 = vmatprep.subr.bf16.mxu0 0
        %1650 = vmatpush1.bf16.msra.mxu0 %v1634
        %1651 = vmatprep.subr.bf16.mxu0 0
        %1652 = vmatpush1.bf16.msra.mxu0 %v1633
        %1653 = vmatprep.subr.bf16.mxu0 0
        %1654 = vmatpush1.bf16.msra.mxu0 %v1632
        %1655 = vmatprep.subr.bf16.mxu0 0
        %1656 = vmatpush1.bf16.msra.mxu0 %v1631
        %1657 = vmatprep.subr.bf16.mxu0 0
        %1658 = vmatpush1.bf16.msra.mxu0 %v1630
        %1659 = vmatprep.subr.bf16.mxu0 0
        %1660 = vmatpush1.bf16.msra.mxu0 %v1629
        %1661 = vmatprep.subr.bf16.mxu0 0
        %1662 = vmatpush2.bf16.msra.mxu0 0
        %1663 = vmatprep.subr.bf16.mxu0 0
        %1664 = vmatpush2.bf16.msra.mxu0 0
        %1665 = vmatprep.subr.bf16.mxu0 0
        %1666 = vmatpush2.bf16.msra.mxu0 0
        %1667 = vmatprep.subr.bf16.mxu0 0
        %1668 = vmatpush2.bf16.msra.mxu0 0
        %1669 = vmatprep.subr.bf16.mxu0 0
        %1670 = vmatpush2.bf16.msra.mxu0 0
        %1671 = vmatprep.subr.bf16.mxu0 0
        %1672 = vmatpush2.bf16.msra.mxu0 0
        %1673 = vmatprep.subr.bf16.mxu0 0
        %1674 = vmatpush2.bf16.msra.mxu0 0
        %1675 = vmatprep.subr.bf16.mxu0 0
        %1676 = vmatpush2.bf16.msra.mxu0 0
        %1677 = vmatprep.mubr.bf16.mxu0 0
        %1678 = vmatmul.mubr.bf16.gmra.mxu0 %v1573
        %v1679 = vpop.f32.mrf.mxu0
        %v1680 = vadd.f32 %v1595, %v1679
        %v1681 = vpop.f32.mrf.mxu0
        %v1682 = vpop.f32.mrf.mxu0
        %v1683 = vadd.f32 %v1595, %v1682
        %v1684 = vpop.f32.mrf.mxu0
        %1685 = vdwg.mxu0
        %v1686 = vadd.f32 %v767, %v1680
        %v1687 = vadd.f32 %v768, %v1683
        %v1688 = vld [vmem:[%s11] sm:$0x1]
        %v1689 = vld [vmem:[%s12] sm:$0x1]
        %1690 = vadd.xlane.f32.xlu0 %v1686
        %v1691 = vpop.xlane.xlu0 %1690
        %1692 = vadd.xlane.f32.xlu0 %v1687
        %v1693 = vpop.xlane.xlu0 %1692
        %v1694 = vmul.f32 %v1691, %v734
        %v1695 = vmul.f32 %v1693, %v734
        %v1696 = vsub.f32 %v1686, %v1694
        %v1697 = vsub.f32 %v1687, %v1695
        %v1698 = vmul.f32 %v1696, %v1696
        %v1699 = vmul.f32 %v1697, %v1697
        %1700 = vadd.xlane.f32.xlu0 %v1698
        %v1701 = vpop.xlane.xlu0 %1700
        %1702 = vadd.xlane.f32.xlu0 %v1699
        %v1703 = vpop.xlane.xlu0 %1702
        %v1704 = vmul.f32 %v1701, %v734
        %v1705 = vmul.f32 %v1703, %v734
        %v1706 = vadd.f32 %v1704, 1e-12
        %v1707 = vadd.f32 %v1705, 1e-12
        %v1708 = vrsqrt.pop %v1706
        %v1709 = vrsqrt.pop %v1707
        %v1710 = vmul.f32 %v1696, %v1708
        %v1711 = vmul.f32 %v1697, %v1709
        %v1713 = vlaneseq
        %v1714 = vshrl.u32 %v1713, 7
        %v1715 = vsub.s32 0, %v1714
        %v1716 = vrot.slane %v1688, %v1715
        %v1718 = vmul.f32 %v1710, %v1716
        %v1719 = vmul.f32 %v1711, %v1716
        %v1721 = vlaneseq
        %v1722 = vshrl.u32 %v1721, 7
        %v1723 = vsub.s32 0, %v1722
        %v1724 = vrot.slane %v1689, %v1723
        %v1726 = vadd.f32 %v1718, %v1724
        %v1727 = vadd.f32 %v1719, %v1724
        %v1728 = vpack.c.bf16 %v1727, %v1726
        %v1729 = vld [vmem:[#allocation13] sm:$0xff]
        %v1730 = vld [vmem:[#allocation13 + $0x8] sm:$0xff]
        %v1731 = vld [vmem:[#allocation13 + $0x10] sm:$0xff]
        %v1732 = vld [vmem:[#allocation13 + $0x18] sm:$0xff]
        %v1733 = vld [vmem:[#allocation13 + $0x20] sm:$0xff]
        %v1734 = vld [vmem:[#allocation13 + $0x28] sm:$0xff]
        %v1735 = vld [vmem:[#allocation13 + $0x30] sm:$0xff]
        %v1736 = vld [vmem:[#allocation13 + $0x38] sm:$0xff]
        %v1737 = vld [vmem:[#allocation13 + $0x40] sm:$0xff]
        %v1738 = vld [vmem:[#allocation13 + $0x48] sm:$0xff]
        %v1739 = vld [vmem:[#allocation13 + $0x50] sm:$0xff]
        %v1740 = vld [vmem:[#allocation13 + $0x58] sm:$0xff]
        %v1741 = vld [vmem:[#allocation13 + $0x60] sm:$0xff]
        %v1742 = vld [vmem:[#allocation13 + $0x68] sm:$0xff]
        %v1743 = vld [vmem:[#allocation13 + $0x70] sm:$0xff]
        %v1744 = vld [vmem:[#allocation13 + $0x78] sm:$0xff]
        %v1745 = vld [vmem:[%s14] sm:$0x3]
        %v1747 = vlaneseq
        %v1748 = vshrl.u32 %v1747, 7
        %v1749 = vsub.s32 0, %v1748
        %v1750 = vrot.slane %v1745, %v1749
        %v1751 = vlaneseq
        %v1752 = vshrl.u32 %v1751, 7
        %v1753 = vsub.s32 1, %v1752
        %v1754 = vrot.slane %v1745, %v1753
        %v1773 = vunpack.c.l.b16 %v1729
        %v1774 = vunpack.c.h.b16 %v1729
        %v1775 = vunpack.c.l.b16 %v1730
        %v1776 = vunpack.c.h.b16 %v1730
        %v1777 = vunpack.c.l.b16 %v1731
        %v1778 = vunpack.c.h.b16 %v1731
        %v1779 = vunpack.c.l.b16 %v1732
        %v1780 = vunpack.c.h.b16 %v1732
        %v1781 = vunpack.c.l.b16 %v1733
        %v1782 = vunpack.c.h.b16 %v1733
        %v1783 = vunpack.c.l.b16 %v1734
        %v1784 = vunpack.c.h.b16 %v1734
        %v1785 = vunpack.c.l.b16 %v1735
        %v1786 = vunpack.c.h.b16 %v1735
        %v1787 = vunpack.c.l.b16 %v1736
        %v1788 = vunpack.c.h.b16 %v1736
        %v1789 = vunpack.c.l.b16 %v1737
        %v1790 = vunpack.c.h.b16 %v1737
        %v1791 = vunpack.c.l.b16 %v1738
        %v1792 = vunpack.c.h.b16 %v1738
        %v1793 = vunpack.c.l.b16 %v1739
        %v1794 = vunpack.c.h.b16 %v1739
        %v1795 = vunpack.c.l.b16 %v1740
        %v1796 = vunpack.c.h.b16 %v1740
        %v1797 = vunpack.c.l.b16 %v1741
        %v1798 = vunpack.c.h.b16 %v1741
        %v1799 = vunpack.c.l.b16 %v1742
        %v1800 = vunpack.c.h.b16 %v1742
        %v1801 = vunpack.c.l.b16 %v1743
        %v1802 = vunpack.c.h.b16 %v1743
        %v1803 = vunpack.c.l.b16 %v1744
        %v1804 = vunpack.c.h.b16 %v1744
        %v1805 = vpack.c.b16 %v1775, %v1773
        %v1806 = vpack.c.b16 %v1776, %v1774
        %v1807 = vpack.c.b16 %v1779, %v1777
        %v1808 = vpack.c.b16 %v1780, %v1778
        %v1809 = vpack.c.b16 %v1783, %v1781
        %v1810 = vpack.c.b16 %v1784, %v1782
        %v1811 = vpack.c.b16 %v1787, %v1785
        %v1812 = vpack.c.b16 %v1788, %v1786
        %v1813 = vpack.c.b16 %v1791, %v1789
        %v1814 = vpack.c.b16 %v1792, %v1790
        %v1815 = vpack.c.b16 %v1795, %v1793
        %v1816 = vpack.c.b16 %v1796, %v1794
        %v1817 = vpack.c.b16 %v1799, %v1797
        %v1818 = vpack.c.b16 %v1800, %v1798
        %v1819 = vpack.c.b16 %v1803, %v1801
        %v1820 = vpack.c.b16 %v1804, %v1802
        %1837 = vmatprep.subr.bf16.mxu0 %v1820
        %1838 = vmatpush1.bf16.msra.mxu0 %v1819
        %1839 = vmatprep.subr.bf16.mxu0 %v1818
        %1840 = vmatpush1.bf16.msra.mxu0 %v1817
        %1841 = vmatprep.subr.bf16.mxu0 %v1816
        %1842 = vmatpush1.bf16.msra.mxu0 %v1815
        %1843 = vmatprep.subr.bf16.mxu0 %v1814
        %1844 = vmatpush1.bf16.msra.mxu0 %v1813
        %1845 = vmatprep.subr.bf16.mxu0 %v1812
        %1846 = vmatpush1.bf16.msra.mxu0 %v1811
        %1847 = vmatprep.subr.bf16.mxu0 %v1810
        %1848 = vmatpush1.bf16.msra.mxu0 %v1809
        %1849 = vmatprep.subr.bf16.mxu0 %v1808
        %1850 = vmatpush1.bf16.msra.mxu0 %v1807
        %1851 = vmatprep.subr.bf16.mxu0 %v1806
        %1852 = vmatpush1.bf16.msra.mxu0 %v1805
        %1853 = vmatprep.subr.bf16.mxu0 0
        %1854 = vmatpush2.bf16.msra.mxu0 0
        %1855 = vmatprep.subr.bf16.mxu0 0
        %1856 = vmatpush2.bf16.msra.mxu0 0
        %1857 = vmatprep.subr.bf16.mxu0 0
        %1858 = vmatpush2.bf16.msra.mxu0 0
        %1859 = vmatprep.subr.bf16.mxu0 0
        %1860 = vmatpush2.bf16.msra.mxu0 0
        %1861 = vmatprep.subr.bf16.mxu0 0
        %1862 = vmatpush2.bf16.msra.mxu0 0
        %1863 = vmatprep.subr.bf16.mxu0 0
        %1864 = vmatpush2.bf16.msra.mxu0 0
        %1865 = vmatprep.subr.bf16.mxu0 0
        %1866 = vmatpush2.bf16.msra.mxu0 0
        %1867 = vmatprep.subr.bf16.mxu0 0
        %1868 = vmatpush2.bf16.msra.mxu0 0
        %1869 = vmatprep.mubr.bf16.mxu0 0
        %1870 = vmatmul.mubr.bf16.gmra.mxu0 %v1728
        %v1871 = vpop.f32.mrf.mxu0
        %v1872 = vadd.f32 %v1750, %v1871
        %v1873 = vpop.f32.mrf.mxu0
        %v1874 = vadd.f32 %v1754, %v1873
        %v1875 = vpop.f32.mrf.mxu0
        %v1876 = vadd.f32 %v1750, %v1875
        %v1877 = vpop.f32.mrf.mxu0
        %v1878 = vadd.f32 %v1754, %v1877
        %1879 = vdwg.mxu0
        %v1880 = vmul.f32 %v1872, %v1872
        %v1881 = vmul.f32 %v1874, %v1874
        %v1882 = vmul.f32 %v1876, %v1876
        %v1883 = vmul.f32 %v1878, %v1878
        %v1884 = vmul.f32 %v1872, %v1880
        %v1885 = vmul.f32 %v1874, %v1881
        %v1886 = vmul.f32 %v1876, %v1882
        %v1887 = vmul.f32 %v1878, %v1883
        %v1888 = vmul.f32 %v1884, 0.044715
        %v1889 = vmul.f32 %v1885, 0.044715
        %v1890 = vmul.f32 %v1886, 0.044715
        %v1891 = vmul.f32 %v1887, 0.044715
        %v1892 = vadd.f32 %v1872, %v1888
        %v1893 = vadd.f32 %v1874, %v1889
        %v1894 = vadd.f32 %v1876, %v1890
        %v1895 = vadd.f32 %v1878, %v1891
        %v1896 = vmul.f32 %v1892, 0.7978846
        %v1897 = vmul.f32 %v1893, 0.7978846
        %v1898 = vmul.f32 %v1894, 0.7978846
        %v1899 = vmul.f32 %v1895, 0.7978846
        %v1900 = vtanh.pop %v1896
        %v1901 = vtanh.pop %v1897
        %v1902 = vtanh.pop %v1898
        %v1903 = vtanh.pop %v1899
        %v1904 = vadd.f32 %v1900, 1.0
        %v1905 = vadd.f32 %v1901, 1.0
        %v1906 = vadd.f32 %v1902, 1.0
        %v1907 = vadd.f32 %v1903, 1.0
        %v1908 = vmul.f32 %v1904, 0.5
        %v1909 = vmul.f32 %v1905, 0.5
        %v1910 = vmul.f32 %v1906, 0.5
        %v1911 = vmul.f32 %v1907, 0.5
        %v1912 = vmul.f32 %v1872, %v1908
        %v1913 = vmul.f32 %v1874, %v1909
        %v1914 = vmul.f32 %v1876, %v1910
        %v1915 = vmul.f32 %v1878, %v1911
        %v1916 = vpack.c.bf16 %v1914, %v1912
        %v1917 = vpack.c.bf16 %v1915, %v1913
        %v1918 = vld [vmem:[#allocation14] sm:$0xf]
        %v1919 = vld [vmem:[#allocation14 + $0x4] sm:$0xf]
        %v1920 = vld [vmem:[#allocation14 + $0x8] sm:$0xf]
        %v1921 = vld [vmem:[#allocation14 + $0xc] sm:$0xf]
        %v1922 = vld [vmem:[#allocation14 + $0x10] sm:$0xf]
        %v1923 = vld [vmem:[#allocation14 + $0x14] sm:$0xf]
        %v1924 = vld [vmem:[#allocation14 + $0x18] sm:$0xf]
        %v1925 = vld [vmem:[#allocation14 + $0x1c] sm:$0xf]
        %v1926 = vld [vmem:[#allocation14 + $0x20] sm:$0xf]
        %v1927 = vld [vmem:[#allocation14 + $0x24] sm:$0xf]
        %v1928 = vld [vmem:[#allocation14 + $0x28] sm:$0xf]
        %v1929 = vld [vmem:[#allocation14 + $0x2c] sm:$0xf]
        %v1930 = vld [vmem:[#allocation14 + $0x30] sm:$0xf]
        %v1931 = vld [vmem:[#allocation14 + $0x34] sm:$0xf]
        %v1932 = vld [vmem:[#allocation14 + $0x38] sm:$0xf]
        %v1933 = vld [vmem:[#allocation14 + $0x3c] sm:$0xf]
        %v1934 = vld [vmem:[#allocation14 + $0x40] sm:$0xf]
        %v1935 = vld [vmem:[#allocation14 + $0x44] sm:$0xf]
        %v1936 = vld [vmem:[#allocation14 + $0x48] sm:$0xf]
        %v1937 = vld [vmem:[#allocation14 + $0x4c] sm:$0xf]
        %v1938 = vld [vmem:[#allocation14 + $0x50] sm:$0xf]
        %v1939 = vld [vmem:[#allocation14 + $0x54] sm:$0xf]
        %v1940 = vld [vmem:[#allocation14 + $0x58] sm:$0xf]
        %v1941 = vld [vmem:[#allocation14 + $0x5c] sm:$0xf]
        %v1942 = vld [vmem:[#allocation14 + $0x60] sm:$0xf]
        %v1943 = vld [vmem:[#allocation14 + $0x64] sm:$0xf]
        %v1944 = vld [vmem:[#allocation14 + $0x68] sm:$0xf]
        %v1945 = vld [vmem:[#allocation14 + $0x6c] sm:$0xf]
        %v1946 = vld [vmem:[#allocation14 + $0x70] sm:$0xf]
        %v1947 = vld [vmem:[#allocation14 + $0x74] sm:$0xf]
        %v1948 = vld [vmem:[#allocation14 + $0x78] sm:$0xf]
        %v1949 = vld [vmem:[#allocation14 + $0x7c] sm:$0xf]
        %v1950 = vld [vmem:[%s16] sm:$0x1]
        %v1952 = vlaneseq
        %v1953 = vshrl.u32 %v1952, 7
        %v1954 = vsub.s32 0, %v1953
        %v1955 = vrot.slane %v1950, %v1954
        %v1989 = vunpack.c.l.b16 %v1918
        %v1990 = vunpack.c.l.b16 %v1919
        %v1991 = vunpack.c.l.b16 %v1920
        %v1992 = vunpack.c.l.b16 %v1921
        %v1993 = vunpack.c.l.b16 %v1922
        %v1994 = vunpack.c.l.b16 %v1923
        %v1995 = vunpack.c.l.b16 %v1924
        %v1996 = vunpack.c.l.b16 %v1925
        %v1997 = vunpack.c.l.b16 %v1926
        %v1998 = vunpack.c.l.b16 %v1927
        %v1999 = vunpack.c.l.b16 %v1928
        %v2000 = vunpack.c.l.b16 %v1929
        %v2001 = vunpack.c.l.b16 %v1930
        %v2002 = vunpack.c.l.b16 %v1931
        %v2003 = vunpack.c.l.b16 %v1932
        %v2004 = vunpack.c.l.b16 %v1933
        %v2005 = vunpack.c.l.b16 %v1934
        %v2006 = vunpack.c.l.b16 %v1935
        %v2007 = vunpack.c.l.b16 %v1936
        %v2008 = vunpack.c.l.b16 %v1937
        %v2009 = vunpack.c.l.b16 %v1938
        %v2010 = vunpack.c.l.b16 %v1939
        %v2011 = vunpack.c.l.b16 %v1940
        %v2012 = vunpack.c.l.b16 %v1941
        %v2013 = vunpack.c.l.b16 %v1942
        %v2014 = vunpack.c.l.b16 %v1943
        %v2015 = vunpack.c.l.b16 %v1944
        %v2016 = vunpack.c.l.b16 %v1945
        %v2017 = vunpack.c.l.b16 %v1946
        %v2018 = vunpack.c.l.b16 %v1947
        %v2019 = vunpack.c.l.b16 %v1948
        %v2020 = vunpack.c.l.b16 %v1949
        %v2021 = vpack.c.b16 %v1990, %v1989
        %v2022 = vpack.c.b16 %v1992, %v1991
        %v2023 = vpack.c.b16 %v1994, %v1993
        %v2024 = vpack.c.b16 %v1996, %v1995
        %v2025 = vpack.c.b16 %v1998, %v1997
        %v2026 = vpack.c.b16 %v2000, %v1999
        %v2027 = vpack.c.b16 %v2002, %v2001
        %v2028 = vpack.c.b16 %v2004, %v2003
        %v2029 = vpack.c.b16 %v2006, %v2005
        %v2030 = vpack.c.b16 %v2008, %v2007
        %v2031 = vpack.c.b16 %v2010, %v2009
        %v2032 = vpack.c.b16 %v2012, %v2011
        %v2033 = vpack.c.b16 %v2014, %v2013
        %v2034 = vpack.c.b16 %v2016, %v2015
        %v2035 = vpack.c.b16 %v2018, %v2017
        %v2036 = vpack.c.b16 %v2020, %v2019
        %2053 = vmatprep.subr.bf16.mxu0 0
        %2054 = vmatpush1.bf16.msra.mxu0 %v2028
        %2055 = vmatprep.subr.bf16.mxu0 0
        %2056 = vmatpush1.bf16.msra.mxu0 %v2027
        %2057 = vmatprep.subr.bf16.mxu0 0
        %2058 = vmatpush1.bf16.msra.mxu0 %v2026
        %2059 = vmatprep.subr.bf16.mxu0 0
        %2060 = vmatpush1.bf16.msra.mxu0 %v2025
        %2061 = vmatprep.subr.bf16.mxu0 0
        %2062 = vmatpush1.bf16.msra.mxu0 %v2024
        %2063 = vmatprep.subr.bf16.mxu0 0
        %2064 = vmatpush1.bf16.msra.mxu0 %v2023
        %2065 = vmatprep.subr.bf16.mxu0 0
        %2066 = vmatpush1.bf16.msra.mxu0 %v2022
        %2067 = vmatprep.subr.bf16.mxu0 0
        %2068 = vmatpush1.bf16.msra.mxu0 %v2021
        %2069 = vmatprep.subr.bf16.mxu0 0
        %2070 = vmatpush2.bf16.msra.mxu0 %v2036
        %2071 = vmatprep.subr.bf16.mxu0 0
        %2072 = vmatpush2.bf16.msra.mxu0 %v2035
        %2073 = vmatprep.subr.bf16.mxu0 0
        %2074 = vmatpush2.bf16.msra.mxu0 %v2034
        %2075 = vmatprep.subr.bf16.mxu0 0
        %2076 = vmatpush2.bf16.msra.mxu0 %v2033
        %2077 = vmatprep.subr.bf16.mxu0 0
        %2078 = vmatpush2.bf16.msra.mxu0 %v2032
        %2079 = vmatprep.subr.bf16.mxu0 0
        %2080 = vmatpush2.bf16.msra.mxu0 %v2031
        %2081 = vmatprep.subr.bf16.mxu0 0
        %2082 = vmatpush2.bf16.msra.mxu0 %v2030
        %2083 = vmatprep.subr.bf16.mxu0 0
        %2084 = vmatpush2.bf16.msra.mxu0 %v2029
        %2085 = vmatprep.mubr.bf16.mxu0 %v1917
        %2086 = vmatmul.mubr.bf16.gmra.mxu0 %v1916
        %v2087 = vpop.f32.mrf.mxu0
        %v2088 = vadd.f32 %v1955, %v2087
        %v2089 = vpop.f32.mrf.mxu0
        %v2090 = vpop.f32.mrf.mxu0
        %v2091 = vadd.f32 %v1955, %v2090
        %v2092 = vpop.f32.mrf.mxu0
        %2093 = vdwg.mxu0
        %v2094 = vadd.f32 %v1726, %v2088
        %v2095 = vadd.f32 %v1727, %v2091
        %v2096 = vld [vmem:[%s17] sm:$0x1]
        %v2097 = vld [vmem:[%s18] sm:$0x1]
        %2098 = vadd.xlane.f32.xlu0 %v2094
        %v2099 = vpop.xlane.xlu0 %2098
        %2100 = vadd.xlane.f32.xlu0 %v2095
        %v2101 = vpop.xlane.xlu0 %2100
        %v2102 = vmul.f32 %v2099, %v734
        %v2103 = vmul.f32 %v2101, %v734
        %v2104 = vsub.f32 %v2094, %v2102
        %v2105 = vsub.f32 %v2095, %v2103
        %v2106 = vmul.f32 %v2104, %v2104
        %v2107 = vmul.f32 %v2105, %v2105
        %2108 = vadd.xlane.f32.xlu0 %v2106
        %v2109 = vpop.xlane.xlu0 %2108
        %2110 = vadd.xlane.f32.xlu0 %v2107
        %v2111 = vpop.xlane.xlu0 %2110
        %v2112 = vmul.f32 %v2109, %v734
        %v2113 = vmul.f32 %v2111, %v734
        %v2114 = vadd.f32 %v2112, 1e-12
        %v2115 = vadd.f32 %v2113, 1e-12
        %v2116 = vrsqrt.pop %v2114
        %v2117 = vrsqrt.pop %v2115
        %v2118 = vmul.f32 %v2104, %v2116
        %v2119 = vmul.f32 %v2105, %v2117
        %v2121 = vlaneseq
        %v2122 = vshrl.u32 %v2121, 7
        %v2123 = vsub.s32 0, %v2122
        %v2124 = vrot.slane %v2096, %v2123
        %v2126 = vmul.f32 %v2118, %v2124
        %v2127 = vmul.f32 %v2119, %v2124
        %v2129 = vlaneseq
        %v2130 = vshrl.u32 %v2129, 7
        %v2131 = vsub.s32 0, %v2130
        %v2132 = vrot.slane %v2097, %v2131
        %v2134 = vadd.f32 %v2126, %v2132
        %v2135 = vadd.f32 %v2127, %v2132
        %2136 = vst [vmem:[%s720] sm:$0xff] %v2134
        %2137 = vst [vmem:[%s720 + $0x8] sm:$0xff] %v2135
        %s2138 = sand.u32 %s452, 1
        %s2139 = scalar_lea.sflag [#allocation4], %s2138
        %s2140 = sand.u32 %s452, 1
        %s2141 = smul.addr %s2140, 16
        %s2142 = scalar_lea.vmem [#allocation16], %s2141
        // Predicated region
        $region129: #{tpu_custom_call.1} parent=95 // pred_check
          %p2143 = pneg %p462
        $region130: #{tpu_custom_call.1} parent=95 // pred_check_branch
          %2145 = sbr.rel (%p2143) target = $region132
        $region131: #{tpu_custom_call.1} parent=95 // pred_region
          %s2146 = smul.u32 2, %s40
          %s2148 = ssub.s32 256, 256
          %2149 = vsyncadd %s2139, %s2148
          %s2150 = smul.addr %s2146, 128
          %s2151 = scalar_lea.hbm %s19, %s2150
          %s2152 = sshll.u32 %s2142, 4
          %s2153 = int_to_ptr.vmem [resolvable:$true] %s2152
          %2158 = dma.vmem_to_hbm [thread:$0]  %s2153, 256, %s2151, %s2139, 128, 128, 8
        $region132: #{tpu_custom_call.1} parent=95 // pred_fallthru
          _
      $region96: #{tpu_custom_call.1} parent=5 // pred_fallthru
        _
      %p2159 = scmp.le.s32.totalorder 2, %s35
      // Predicated region
      $region133: #{tpu_custom_call.1} parent=5 // pred_check
        %p2160 = pneg %p2159
      $region134: #{tpu_custom_call.1} parent=5 // pred_check_branch
        %2162 = sbr.rel (%p2160) target = $region136
      $region135: #{tpu_custom_call.1} parent=5 // pred_region
        %s2163 = ssub.s32 %s35, 2
        // Predicated region
        $region137: #{tpu_custom_call.1} parent=135 // pred_check
          %p2164 = pneg %p468
        $region138: #{tpu_custom_call.1} parent=135 // pred_check_branch
          %2166 = sbr.rel (%p2164) target = $region140
        $region139: #{tpu_custom_call.1} parent=135 // pred_region
          %s2167 = sand.u32 %s453, 1
          %s2168 = scalar_lea.sflag [#allocation4], %s2167
          %s2169 = sand.u32 %s453, 1
          %s2170 = smul.addr %s2169, 16
          %s2171 = scalar_lea.vmem [#allocation16], %s2170
          %2172 = dma.done %s2168, 256
        $region140: #{tpu_custom_call.1} parent=135 // pred_fallthru
          _
      $region136: #{tpu_custom_call.1} parent=5 // pred_fallthru
        _
    $region6: #{tpu_custom_call.1} parent=1 // loop_footer
      %s39 = sadd.s32 1, %s35
    $region7: #{tpu_custom_call.1} parent=1 // loop_footer_branch
      %34 = sbr.rel target = $region3
    $region8: #{tpu_custom_call.1} parent=1 // loop_exit
      _
    %2173 = vsyncpa [#allocation3], 1
    %s2174 = scalar_lea.sflag [#allocation3], 1
    %2175 = vsyncpa %s2174, 1
    %2176 = vsyncpa [#allocation6], 1
    %2177 = vsyncpa [#allocation9], 1
    %2178 = vsyncpa [#allocation12], 1
    %2179 = vsyncpa [#allocation15], 1
    %2180 = vsyncpa [#allocation4], 1
    %s2181 = scalar_lea.sflag [#allocation4], 1
    %2182 = vsyncpa %s2181, 1

</llo_original>
